<compile_context>
chip_gen: v7x
topology: tpu7x:2x2x1
jax: 0.10.0
libtpu: 0.0.40
codegen_flags: <defaults>
</compile_context>

<pallas_src>
import functools

import jax
import jax.numpy as jnp
from jax import lax
from jax.experimental import pallas as pl
from jax.experimental.pallas import tpu as pltpu


def _mxu(a, b, dims, compute_dtype):
    """dot_general with f32 accumulation; `dims` are the contracting dims."""
    return lax.dot_general(
        a.astype(compute_dtype), b.astype(compute_dtype),
        dimension_numbers=(dims, ((), ())),
        preferred_element_type=jnp.float32)


def _sca_kernel(x_ref,
                wi_ref, bi_ref,
                wq_ref, bq_ref,
                wk_ref, bk_ref,
                wv_ref, bv_ref,
                woa_ref, wob_ref, bo_ref,
                out_ref, *, tq, compute_dtype):
    """Grid = (batch, query_tile).

    x_ref   : (C, HW)     one batch element, channels-first (lane axis = HW)
    wi/wq/wk: (half, C)   1x1-conv weights in left-multiply form; wq/wk are
                          zero-padded so they read their channel half of x
    wv      : (half, half)
    woa/wob : (C, half)   out_proj weight split along its input channels
    b*      : (rows, 1)   biases (broadcast along the lane axis)
    out_ref : (C, TQ)     output columns for this query tile
    """
    qi = pl.program_id(1)
    half = wq_ref.shape[0]
    scale = 1.0 / (float(half) ** 0.5)

    x = x_ref[...]                                           # (C, HW) f32
    q_start = pl.multiple_of(qi * tq, tq)
    x_q = x_ref[:, pl.ds(q_start, tq)]                       # (C, TQ)

    # Projections (no slicing of x thanks to zero-padded wq/wk).
    k = _mxu(wk_ref[...], x, ((1,), (0,)), compute_dtype) + bk_ref[...]     # (half, HW)
    v = _mxu(wv_ref[...], k, ((1,), (0,)), compute_dtype) + bv_ref[...]     # (half, HW)
    q = (_mxu(wq_ref[...], x_q, ((1,), (0,)), compute_dtype)
         + bq_ref[...]) * scale                                             # (half, TQ)
    xp = _mxu(wi_ref[...], x_q, ((1,), (0,)), compute_dtype) + bi_ref[...]  # (half, TQ)

    # Attention scores for this query tile.  Transposing the tiny (half, TQ)
    # q block keeps both matmuls in natively supported MXU contraction forms
    # (no full-k transpose, no (HW, HW) materialization across tiles).
    qt = q.T                                                                # (TQ, half)
    s = _mxu(qt, k, ((1,), (0,)), compute_dtype)                            # (TQ, HW)
    s = s - jnp.max(s, axis=-1, keepdims=True)
    p = jnp.exp(s)
    p = p * pl.reciprocal(jnp.sum(p, axis=-1, keepdims=True), approx=True)  # EUP

    # Attention output, channels-first: contract the key (lane) axis of both.
    att = _mxu(v, p, ((1,), (1,)), compute_dtype)                           # (half, TQ)

    # out_proj on cat([xp; att]) along channels, without the concat.
    out = (_mxu(woa_ref[...], xp, ((1,), (0,)), compute_dtype)
           + _mxu(wob_ref[...], att, ((1,), (0,)), compute_dtype)
           + bo_ref[...])                                                   # (C, TQ)
    out_ref[...] = out.astype(out_ref.dtype)


def _pick_query_tile(hw, max_score_bytes=4 * 1024 * 1024):
    """Largest query tile that divides HW, is a multiple of 128, keeps the f32
    (TQ, HW) score tile under `max_score_bytes`, and (when possible) yields at
    least two tiles so v7x megacore has grid granularity even at small B."""
    if hw % 128 != 0:
        return hw                     # single tile; block equals the full dim
    tq = hw
    while (tq > 128 and tq % 256 == 0
           and (tq * hw * 4 > max_score_bytes or tq == hw)):
        tq //= 2
    return tq


def spatial_cross_attention(x_nchw, params, *, compute_dtype=jnp.float32):
    """x_nchw: (B, features, H, W) float32 -> (B, features, H, W) float32.

    Set compute_dtype=jnp.bfloat16 for bf16 MXU operands with f32 accumulation
    (recommended on v6e/v7x at realistic channel counts; loosen test rtol).
    """
    B, C, H, W = x_nchw.shape
    HW = H * W
    half = C // 2
    TQ = _pick_query_tile(HW)
    nq = HW // TQ

    # NCHW -> (B, C, HW): pure reshape, no transpose.  Lane axis = HW.
    x = x_nchw.reshape(B, C, HW)

    zeros = jnp.zeros((half, half), jnp.float32)
    # Left-multiply weights; wq/wk zero-padded to pick their channel half of x.
    wi = params["wi"].T                                       # (half, C)
    wq = jnp.concatenate([params["wq"].T, zeros], axis=1)     # (half, C)
    wk = jnp.concatenate([zeros, params["wk"].T], axis=1)     # (half, C)
    wv = params["wv"].T                                       # (half, half)
    woa = params["wo"][:half, :].T                            # (C, half) -> xp path
    wob = params["wo"][half:, :].T                            # (C, half) -> attn path
    bi, bq, bk, bv, bo = (params[n].T for n in ("bi", "bq", "bk", "bv", "bo"))

    def wspec(shape):
        # Grid-invariant block index: weights are DMA'd once and stay resident.
        return pl.BlockSpec(shape, lambda b, qi: tuple(0 for _ in shape))

    kernel = functools.partial(_sca_kernel, tq=TQ, compute_dtype=compute_dtype)

    flops = 2 * B * half * HW * (nq * (C + half) + 4 * C + 2 * HW)
    cost = pl.CostEstimate(
        flops=int(flops),
        transcendentals=int(B * HW * HW),
        bytes_accessed=int(4 * (2 * B * C * HW + 3 * half * C + half * half
                                + 2 * C * half + 4 * half + C)))

    out = pl.pallas_call(
        kernel,
        out_shape=jax.ShapeDtypeStruct((B, C, HW), jnp.float32),
        grid_spec=pltpu.PrefetchScalarGridSpec(
            num_scalar_prefetch=0,
            grid=(B, nq),
            in_specs=[
                # Full (C, HW) slab per batch element; the block index is
                # invariant along the query-tile axis, so it is fetched once
                # per batch element and stays resident across q tiles.
                pl.BlockSpec((None, C, HW), lambda b, qi: (b, 0, 0)),
                wspec((half, C)), wspec((half, 1)),          # input_proj
                wspec((half, C)), wspec((half, 1)),          # q_proj (padded)
                wspec((half, C)), wspec((half, 1)),          # k_proj (padded)
                wspec((half, half)), wspec((half, 1)),       # v_proj
                wspec((C, half)), wspec((C, half)), wspec((C, 1)),  # out_proj split
            ],
            out_specs=pl.BlockSpec((None, C, TQ), lambda b, qi: (b, 0, qi)),
        ),
        compiler_params=pltpu.CompilerParams(
            dimension_semantics=("parallel", "parallel"),
            vmem_limit_bytes=32 * 1024 * 1024),
        cost_estimate=cost,
    )(
        x,
        wi, bi, wq, bq, wk, bk, wv, bv, woa, wob, bo,
    )

    return out.reshape(B, C, H, W)


def init_params(key, features):
    """Deterministic synthetic weights. 1x1 conv weight (Cout, Cin) stored transposed (Cin, Cout)."""
    half = features // 2
    ks = jax.random.split(key, 10)

    def w(k, cin, cout):
        return jax.random.normal(k, (cin, cout), jnp.float32) * (1.0 / jnp.sqrt(cin))

    def b(k, cout):
        return jax.random.normal(k, (1, cout), jnp.float32) * 0.01

    return {
        "wq": w(ks[0], half, half), "bq": b(ks[1], half),
        "wk": w(ks[2], half, half), "bk": b(ks[3], half),
        "wv": w(ks[4], half, half), "bv": b(ks[5], half),
        "wi": w(ks[6], features, half), "bi": b(ks[7], half),
        "wo": w(ks[8], features, features), "bo": b(ks[9], features),
    }


def reference_jax(x_nchw, params):
    """Pure-JAX reference mirroring the PyTorch forward, for a sanity check."""
    B, C, H, W = x_nchw.shape
    half = C // 2
    x = jnp.transpose(x_nchw, (0, 2, 3, 1)).reshape(B, H * W, C)
    q_in, k_in = x[..., :half], x[..., half:]
    xp = x @ params["wi"] + params["bi"]
    q = q_in @ params["wq"] + params["bq"]
    k = k_in @ params["wk"] + params["bk"]
    v = k @ params["wv"] + params["bv"]
    attn = jnp.einsum("bqc,bkc->bqk", q, k) / (half ** 0.5)
    attn = jax.nn.softmax(attn, axis=-1)
    out = jnp.einsum("bqk,bkc->bqc", attn, v)
    cat = jnp.concatenate([xp, out], axis=-1)
    y = cat @ params["wo"] + params["bo"]
    return jnp.transpose(y.reshape(B, H, W, C), (0, 3, 1, 2))


if __name__ == "__main__":
    key = jax.random.PRNGKey(0)
    kx, kp = jax.random.split(key)

    B, features, H, W = 2, 4, 16, 16
    x = jax.random.normal(kx, (B, features, H, W), jnp.float32)
    params = init_params(kp, features)

    y = spatial_cross_attention(x, params)
    y = jax.block_until_ready(y)

    y_ref = reference_jax(x, params)
    assert y.shape == (B, features, H, W)
    # Slightly relaxed tolerance: softmax denominator uses the EUP approximate
    # reciprocal (pl.reciprocal(approx=True)); still far tighter than any
    # structural/layout bug would produce.
    assert jnp.allclose(y, y_ref, atol=2e-3, rtol=2e-3), "mismatch vs reference"

    print("KERNEL_OK")
</pallas_src>

<mosaic_0001>
module attributes {stable_mosaic.version = 11 : i64} {
  func.func @_sca_kernel(%arg0: i32, %arg1: i32, %arg2: memref<1x4x256xf32, #tpu.memory_space<vmem>>, %arg3: memref<2x4xf32, #tpu.memory_space<vmem>>, %arg4: memref<2x1xf32, #tpu.memory_space<vmem>>, %arg5: memref<2x4xf32, #tpu.memory_space<vmem>>, %arg6: memref<2x1xf32, #tpu.memory_space<vmem>>, %arg7: memref<2x4xf32, #tpu.memory_space<vmem>>, %arg8: memref<2x1xf32, #tpu.memory_space<vmem>>, %arg9: memref<2x2xf32, #tpu.memory_space<vmem>>, %arg10: memref<2x1xf32, #tpu.memory_space<vmem>>, %arg11: memref<4x2xf32, #tpu.memory_space<vmem>>, %arg12: memref<4x2xf32, #tpu.memory_space<vmem>>, %arg13: memref<4x1xf32, #tpu.memory_space<vmem>>, %arg14: memref<1x4x128xf32, #tpu.memory_space<vmem>>) attributes {dimension_semantics = [#tpu.dimension_semantics<parallel>, #tpu.dimension_semantics<parallel>], iteration_bounds = array<i64: 2, 2>, scalar_prefetch = 0 : i64, scratch_operands = 0 : i64, tpu.core_type = #tpu.core_type<tc>, window_params = [{transform_indices = @transform_0, window_bounds = array<i64: 1, 4, 256>}, {pipeline_mode = #tpu.pipeline_mode<synchronous>, transform_indices = @transform_1, window_bounds = array<i64: 2, 4>}, {pipeline_mode = #tpu.pipeline_mode<synchronous>, transform_indices = @transform_2, window_bounds = array<i64: 2, 1>}, {pipeline_mode = #tpu.pipeline_mode<synchronous>, transform_indices = @transform_3, window_bounds = array<i64: 2, 4>}, {pipeline_mode = #tpu.pipeline_mode<synchronous>, transform_indices = @transform_4, window_bounds = array<i64: 2, 1>}, {pipeline_mode = #tpu.pipeline_mode<synchronous>, transform_indices = @transform_5, window_bounds = array<i64: 2, 4>}, {pipeline_mode = #tpu.pipeline_mode<synchronous>, transform_indices = @transform_6, window_bounds = array<i64: 2, 1>}, {pipeline_mode = #tpu.pipeline_mode<synchronous>, transform_indices = @transform_7, window_bounds = array<i64: 2, 2>}, {pipeline_mode = #tpu.pipeline_mode<synchronous>, transform_indices = @transform_8, window_bounds = array<i64: 2, 1>}, {pipeline_mode = #tpu.pipeline_mode<synchronous>, transform_indices = @transform_9, window_bounds = array<i64: 4, 2>}, {pipeline_mode = #tpu.pipeline_mode<synchronous>, transform_indices = @transform_10, window_bounds = array<i64: 4, 2>}, {pipeline_mode = #tpu.pipeline_mode<synchronous>, transform_indices = @transform_11, window_bounds = array<i64: 4, 1>}, {transform_indices = @transform_12, window_bounds = array<i64: 1, 4, 128>}]} {
    %c0 = arith.constant 0 : index
    %c0_0 = arith.constant 0 : index
    %c0_1 = arith.constant 0 : index
    %0 = vector.load %arg2[%c0, %c0_0, %c0_1] : memref<1x4x256xf32, #tpu.memory_space<vmem>>, vector<1x4x256xf32>
    %1 = vector.shape_cast %0 : vector<1x4x256xf32> to vector<4x256xf32>
    %c128_i32 = arith.constant 128 : i32
    %2 = arith.muli %arg1, %c128_i32 : i32
    %3 = tpu.assume_multiple %2, 128 : i32
    %c0_2 = arith.constant 0 : index
    %c0_3 = arith.constant 0 : index
    %4 = arith.index_cast %3 : i32 to index
    %5 = vector.load %arg2[%c0_2, %c0_3, %4] : memref<1x4x256xf32, #tpu.memory_space<vmem>>, vector<1x4x128xf32>
    %6 = vector.shape_cast %5 : vector<1x4x128xf32> to vector<4x128xf32>
    %c0_4 = arith.constant 0 : index
    %c0_5 = arith.constant 0 : index
    %7 = vector.load %arg7[%c0_4, %c0_5] : memref<2x4xf32, #tpu.memory_space<vmem>>, vector<2x4xf32>
    %cst = arith.constant dense<0.000000e+00> : vector<2x256xf32>
    %8 = tpu.matmul %7, %1, %cst {dimension_numbers = #tpu.dot_dimension_numbers<[1], [0], [0], [1], [0, 0, 1, 1], [], []>} : vector<2x4xf32>, vector<4x256xf32>, vector<2x256xf32> -> vector<2x256xf32>
    %c0_6 = arith.constant 0 : index
    %c0_7 = arith.constant 0 : index
    %9 = vector.load %arg8[%c0_6, %c0_7] : memref<2x1xf32, #tpu.memory_space<vmem>>, vector<2x1xf32>
    %10 = vector.broadcast %9 : vector<2x1xf32> to vector<2x256xf32>
    %11 = arith.addf %8, %10 : vector<2x256xf32>
    %c0_8 = arith.constant 0 : index
    %c0_9 = arith.constant 0 : index
    %12 = vector.load %arg9[%c0_8, %c0_9] : memref<2x2xf32, #tpu.memory_space<vmem>>, vector<2x2xf32>
    %cst_10 = arith.constant dense<0.000000e+00> : vector<2x256xf32>
    %13 = tpu.matmul %12, %11, %cst_10 {dimension_numbers = #tpu.dot_dimension_numbers<[1], [0], [0], [1], [0, 0, 1, 1], [], []>} : vector<2x2xf32>, vector<2x256xf32>, vector<2x256xf32> -> vector<2x256xf32>
    %c0_11 = arith.constant 0 : index
    %c0_12 = arith.constant 0 : index
    %14 = vector.load %arg10[%c0_11, %c0_12] : memref<2x1xf32, #tpu.memory_space<vmem>>, vector<2x1xf32>
    %15 = vector.broadcast %14 : vector<2x1xf32> to vector<2x256xf32>
    %16 = arith.addf %13, %15 : vector<2x256xf32>
    %c0_13 = arith.constant 0 : index
    %c0_14 = arith.constant 0 : index
    %17 = vector.load %arg5[%c0_13, %c0_14] : memref<2x4xf32, #tpu.memory_space<vmem>>, vector<2x4xf32>
    %cst_15 = arith.constant dense<0.000000e+00> : vector<2x128xf32>
    %18 = tpu.matmul %17, %6, %cst_15 {dimension_numbers = #tpu.dot_dimension_numbers<[1], [0], [0], [1], [0, 0, 1, 1], [], []>} : vector<2x4xf32>, vector<4x128xf32>, vector<2x128xf32> -> vector<2x128xf32>
    %c0_16 = arith.constant 0 : index
    %c0_17 = arith.constant 0 : index
    %19 = vector.load %arg6[%c0_16, %c0_17] : memref<2x1xf32, #tpu.memory_space<vmem>>, vector<2x1xf32>
    %20 = vector.broadcast %19 : vector<2x1xf32> to vector<2x128xf32>
    %21 = arith.addf %18, %20 : vector<2x128xf32>
    %cst_18 = arith.constant 0.707106769 : f32
    %22 = vector.broadcast %cst_18 : f32 to vector<2x128xf32>
    %23 = arith.mulf %21, %22 : vector<2x128xf32>
    %c0_19 = arith.constant 0 : index
    %c0_20 = arith.constant 0 : index
    %24 = vector.load %arg3[%c0_19, %c0_20] : memref<2x4xf32, #tpu.memory_space<vmem>>, vector<2x4xf32>
    %cst_21 = arith.constant dense<0.000000e+00> : vector<2x128xf32>
    %25 = tpu.matmul %24, %6, %cst_21 {dimension_numbers = #tpu.dot_dimension_numbers<[1], [0], [0], [1], [0, 0, 1, 1], [], []>} : vector<2x4xf32>, vector<4x128xf32>, vector<2x128xf32> -> vector<2x128xf32>
    %c0_22 = arith.constant 0 : index
    %c0_23 = arith.constant 0 : index
    %26 = vector.load %arg4[%c0_22, %c0_23] : memref<2x1xf32, #tpu.memory_space<vmem>>, vector<2x1xf32>
    %27 = vector.broadcast %26 : vector<2x1xf32> to vector<2x128xf32>
    %28 = arith.addf %25, %27 : vector<2x128xf32>
    %29 = tpu.transpose %23, [1, 0] : vector<2x128xf32> -> vector<128x2xf32>
    %cst_24 = arith.constant dense<0.000000e+00> : vector<128x256xf32>
    %30 = tpu.matmul %29, %11, %cst_24 {dimension_numbers = #tpu.dot_dimension_numbers<[1], [0], [0], [1], [0, 0, 1, 1], [], []>} : vector<128x2xf32>, vector<2x256xf32>, vector<128x256xf32> -> vector<128x256xf32>
    %cst_25 = arith.constant dense<0xFF800000> : vector<128xf32>
    %31 = vector.multi_reduction <maximumf>, %30, %cst_25 [1] : vector<128x256xf32> to vector<128xf32>
    %32 = vector.shape_cast %31 : vector<128xf32> to vector<128x1xf32>
    %33 = vector.broadcast %32 : vector<128x1xf32> to vector<128x256xf32>
    %34 = arith.subf %30, %33 : vector<128x256xf32>
    %35 = math.exp %34 : vector<128x256xf32>
    %cst_26 = arith.constant dense<0.000000e+00> : vector<128xf32>
    %36 = vector.multi_reduction <add>, %35, %cst_26 [1] : vector<128x256xf32> to vector<128xf32>
    %37 = vector.shape_cast %36 : vector<128xf32> to vector<128x1xf32>
    %38 = tpu.reciprocal %37 {approx = true} : vector<128x1xf32> -> vector<128x1xf32>
    %39 = vector.broadcast %38 : vector<128x1xf32> to vector<128x256xf32>
    %40 = arith.mulf %35, %39 : vector<128x256xf32>
    %cst_27 = arith.constant dense<0.000000e+00> : vector<2x128xf32>
    %41 = tpu.matmul %16, %40, %cst_27 {dimension_numbers = #tpu.dot_dimension_numbers<[1], [1], [0], [0], [0, 0, 1, 0], [], []>} : vector<2x256xf32>, vector<128x256xf32>, vector<2x128xf32> -> vector<2x128xf32>
    %c0_28 = arith.constant 0 : index
    %c0_29 = arith.constant 0 : index
    %42 = vector.load %arg11[%c0_28, %c0_29] : memref<4x2xf32, #tpu.memory_space<vmem>>, vector<4x2xf32>
    %cst_30 = arith.constant dense<0.000000e+00> : vector<4x128xf32>
    %43 = tpu.matmul %42, %28, %cst_30 {dimension_numbers = #tpu.dot_dimension_numbers<[1], [0], [0], [1], [0, 0, 1, 1], [], []>} : vector<4x2xf32>, vector<2x128xf32>, vector<4x128xf32> -> vector<4x128xf32>
    %c0_31 = arith.constant 0 : index
    %c0_32 = arith.constant 0 : index
    %44 = vector.load %arg12[%c0_31, %c0_32] : memref<4x2xf32, #tpu.memory_space<vmem>>, vector<4x2xf32>
    %cst_33 = arith.constant dense<0.000000e+00> : vector<4x128xf32>
    %45 = tpu.matmul %44, %41, %cst_33 {dimension_numbers = #tpu.dot_dimension_numbers<[1], [0], [0], [1], [0, 0, 1, 1], [], []>} : vector<4x2xf32>, vector<2x128xf32>, vector<4x128xf32> -> vector<4x128xf32>
    %46 = arith.addf %43, %45 : vector<4x128xf32>
    %c0_34 = arith.constant 0 : index
    %c0_35 = arith.constant 0 : index
    %47 = vector.load %arg13[%c0_34, %c0_35] : memref<4x1xf32, #tpu.memory_space<vmem>>, vector<4x1xf32>
    %48 = vector.broadcast %47 : vector<4x1xf32> to vector<4x128xf32>
    %49 = arith.addf %46, %48 : vector<4x128xf32>
    %c0_36 = arith.constant 0 : index
    %c0_37 = arith.constant 0 : index
    %c0_38 = arith.constant 0 : index
    %50 = vector.load %arg14[%c0_36, %c0_37, %c0_38] : memref<1x4x128xf32, #tpu.memory_space<vmem>>, vector<1x4x128xf32>
    %51 = vector.shape_cast %50 : vector<1x4x128xf32> to vector<4x128xf32>
    %52 = vector.shape_cast %49 : vector<4x128xf32> to vector<1x4x128xf32>
    tpu.vector_store %arg14[%c0_36, %c0_37, %c0_38], %52 {strides = array<i32>} : memref<1x4x128xf32, #tpu.memory_space<vmem>>, vector<1x4x128xf32>,
    return
  }
  func.func @transform_0(%arg0: i32, %arg1: i32) -> (i32, i32, i32) {
    %c0_i32 = arith.constant 0 : i32
    %c0_i32_0 = arith.constant 0 : i32
    %c0_i32_1 = arith.constant 0 : i32
    return %arg0, %c0_i32, %c0_i32_0 : i32, i32, i32
  }
  func.func @transform_1(%arg0: i32, %arg1: i32) -> (i32, i32) {
    %c0_i32 = arith.constant 0 : i32
    %c0_i32_0 = arith.constant 0 : i32
    %c0_i32_1 = arith.constant 0 : i32
    return %c0_i32, %c0_i32_0 : i32, i32
  }
  func.func @transform_2(%arg0: i32, %arg1: i32) -> (i32, i32) {
    %c0_i32 = arith.constant 0 : i32
    %c0_i32_0 = arith.constant 0 : i32
    %c0_i32_1 = arith.constant 0 : i32
    return %c0_i32, %c0_i32_0 : i32, i32
  }
  func.func @transform_3(%arg0: i32, %arg1: i32) -> (i32, i32) {
    %c0_i32 = arith.constant 0 : i32
    %c0_i32_0 = arith.constant 0 : i32
    %c0_i32_1 = arith.constant 0 : i32
    return %c0_i32, %c0_i32_0 : i32, i32
  }
  func.func @transform_4(%arg0: i32, %arg1: i32) -> (i32, i32) {
    %c0_i32 = arith.constant 0 : i32
    %c0_i32_0 = arith.constant 0 : i32
    %c0_i32_1 = arith.constant 0 : i32
    return %c0_i32, %c0_i32_0 : i32, i32
  }
  func.func @transform_5(%arg0: i32, %arg1: i32) -> (i32, i32) {
    %c0_i32 = arith.constant 0 : i32
    %c0_i32_0 = arith.constant 0 : i32
    %c0_i32_1 = arith.constant 0 : i32
    return %c0_i32, %c0_i32_0 : i32, i32
  }
  func.func @transform_6(%arg0: i32, %arg1: i32) -> (i32, i32) {
    %c0_i32 = arith.constant 0 : i32
    %c0_i32_0 = arith.constant 0 : i32
    %c0_i32_1 = arith.constant 0 : i32
    return %c0_i32, %c0_i32_0 : i32, i32
  }
  func.func @transform_7(%arg0: i32, %arg1: i32) -> (i32, i32) {
    %c0_i32 = arith.constant 0 : i32
    %c0_i32_0 = arith.constant 0 : i32
    %c0_i32_1 = arith.constant 0 : i32
    return %c0_i32, %c0_i32_0 : i32, i32
  }
  func.func @transform_8(%arg0: i32, %arg1: i32) -> (i32, i32) {
    %c0_i32 = arith.constant 0 : i32
    %c0_i32_0 = arith.constant 0 : i32
    %c0_i32_1 = arith.constant 0 : i32
    return %c0_i32, %c0_i32_0 : i32, i32
  }
  func.func @transform_9(%arg0: i32, %arg1: i32) -> (i32, i32) {
    %c0_i32 = arith.constant 0 : i32
    %c0_i32_0 = arith.constant 0 : i32
    %c0_i32_1 = arith.constant 0 : i32
    return %c0_i32, %c0_i32_0 : i32, i32
  }
  func.func @transform_10(%arg0: i32, %arg1: i32) -> (i32, i32) {
    %c0_i32 = arith.constant 0 : i32
    %c0_i32_0 = arith.constant 0 : i32
    %c0_i32_1 = arith.constant 0 : i32
    return %c0_i32, %c0_i32_0 : i32, i32
  }
  func.func @transform_11(%arg0: i32, %arg1: i32) -> (i32, i32) {
    %c0_i32 = arith.constant 0 : i32
    %c0_i32_0 = arith.constant 0 : i32
    %c0_i32_1 = arith.constant 0 : i32
    return %c0_i32, %c0_i32_0 : i32, i32
  }
  func.func @transform_12(%arg0: i32, %arg1: i32) -> (i32, i32, i32) {
    %c0_i32 = arith.constant 0 : i32
    %c0_i32_0 = arith.constant 0 : i32
    return %arg0, %c0_i32, %arg1 : i32, i32, i32
  }
}

</mosaic_0001>

<llo_original>
// kernel: tpu_custom_call.1
$region0: #{tpu_custom_call.1}
  #allocation0 [shape = 'u32[]', space=smem, size = 0x4, offset = 0x4, fixed_abs, tag = 'smem constant byte address 0x4 - core index']
  #allocation1 [shape = 'u32[144,128]{1,0:T(1,128)}', space=vmem, size = 0x12000, scoped, tag = 'internal scratch']
  %s0 = inlined_call_operand.hbm [shape: f32[2,4,256], index: 0, kind: input, shape index: {}]
  %s1 = inlined_call_operand.vmem [shape: f32[2,4], index: 1, kind: input, shape index: {}]
  %s2 = inlined_call_operand.vmem [shape: f32[2,1], index: 2, kind: input, shape index: {}]
  %s3 = inlined_call_operand.vmem [shape: f32[2,4], index: 3, kind: input, shape index: {}]
  %s4 = inlined_call_operand.vmem [shape: f32[2,1], index: 4, kind: input, shape index: {}]
  %s5 = inlined_call_operand.vmem [shape: f32[2,4], index: 5, kind: input, shape index: {}]
  %s6 = inlined_call_operand.vmem [shape: f32[2,1], index: 6, kind: input, shape index: {}]
  %s7 = inlined_call_operand.vmem [shape: f32[2,2], index: 7, kind: input, shape index: {}]
  %s8 = inlined_call_operand.vmem [shape: f32[2,1], index: 8, kind: input, shape index: {}]
  %s9 = inlined_call_operand.vmem [shape: f32[4,2], index: 9, kind: input, shape index: {}]
  %s10 = inlined_call_operand.vmem [shape: f32[4,2], index: 10, kind: input, shape index: {}]
  %s11 = inlined_call_operand.vmem [shape: f32[4,1], index: 11, kind: input, shape index: {}]
  %s12 = inlined_call_operand.hbm [shape: f32[2,4,256], index: 12, kind: output, shape index: {}]
  %s13 = sld [smem:[#allocation0]]
  $region85: #{tpu_custom_call.1} parent=0
    _
  %s15 = ssub.s32 1, %s13
  %s16 = scalar_select 0, %s15, %s13
  $region1: #{tpu_custom_call.1} parent=0
    #allocation2 [shape = 'u8[8192]{0}', space=vmem, size = 0x2000, scoped, tag = 'input window, operand 0']
    #allocation3 [shape = 's32[2]{0}', space=sflag, size = 0x8, scoped, tag = 'scoped memory for tpu_custom_call.1']
    #allocation4 [shape = 's32[2]{0}', space=sflag, size = 0x8, scoped, tag = 'scoped memory for tpu_custom_call.1']
    #allocation5 [shape = 'u8[4096]{0}', space=vmem, size = 0x1000, scoped, tag = 'output window, operand 0']
    %17 = vsyncpa [#allocation3], 0
    %s18 = scalar_lea.sflag [#allocation3], 1
    %19 = vsyncpa %s18, 0
    %20 = vsyncpa [#allocation4], 0
    %s21 = scalar_lea.sflag [#allocation4], 1
    %22 = vsyncpa %s21, 0
    loop: start=0, step=1, limit=6
    $region2: #{tpu_custom_call.1} parent=1 // loop_pre_header
      _
    $region3: #{tpu_custom_call.1} parent=1 // loop_header
      %s24 = sphi 0, %s28
      %p25 = scmp.ge.s32.totalorder %s24, 6
      %s31 = sphi 0, %s43
      %s32 = sphi 0, %s39
      %s33 = sphi 0, %s31
      %s34 = sphi 0, %s32
      %s35 = sphi 0, %s33
      %s36 = sphi 0, %s34
      %s46 = sphi 0, %s48
      %s49 = sphi 0, %s46
      %s50 = sphi 0, %s49
      %s66 = sphi 0, %s50
      %s70 = sphi 0, %s70
      %s72 = sphi 0, %s70
      %s73 = sphi 0, %s72
      %s87 = sphi 0, %s73
      %s91 = sphi 0, %s91
      %s93 = sphi 0, %s91
      %s94 = sphi 0, %s93
      %s108 = sphi 0, %s94
      %s112 = sphi 0, %s112
      %s114 = sphi 0, %s112
      %s115 = sphi 0, %s114
      %s129 = sphi 0, %s115
      %s133 = sphi 0, %s133
      %s135 = sphi 0, %s133
      %s136 = sphi 0, %s135
      %s150 = sphi 0, %s136
      %s154 = sphi 0, %s154
      %s156 = sphi 0, %s154
      %s157 = sphi 0, %s156
      %s171 = sphi 0, %s157
      %s175 = sphi 0, %s175
      %s177 = sphi 0, %s175
      %s178 = sphi 0, %s177
      %s192 = sphi 0, %s178
      %s196 = sphi 0, %s196
      %s198 = sphi 0, %s196
      %s199 = sphi 0, %s198
      %s213 = sphi 0, %s199
      %s217 = sphi 0, %s217
      %s219 = sphi 0, %s217
      %s220 = sphi 0, %s219
      %s234 = sphi 0, %s220
      %s238 = sphi 0, %s238
      %s240 = sphi 0, %s238
      %s241 = sphi 0, %s240
      %s255 = sphi 0, %s241
      %s259 = sphi 0, %s259
      %s261 = sphi 0, %s259
      %s262 = sphi 0, %s261
      %s276 = sphi 0, %s262
      %s280 = sphi 0, %s280
      %s282 = sphi 0, %s280
      %s283 = sphi 0, %s282
      %s297 = sphi 0, %s283
      %s305 = sphi 0, %s307
      %s308 = sphi 0, %s305
      %s309 = sphi 0, %s308
      %s325 = sphi 0, %s309
    $region4: #{tpu_custom_call.1} parent=1 // loop_header_branch
      %27 = sbr.rel (%p25) target = $region8
    $region5: #{tpu_custom_call.1} parent=1 // loop_body
      %s29 = ssub.s32 %s24, 1
      %s30 = ssub.s32 %s24, 2
      %s37 = sadd.s32 1, %s32
      %p38 = scmp.ge.s32.totalorder %s37, 2
      %s39 = scalar_select %p38, 0, %s37
      %s40 = sadd.s32 1, %s31
      %s41 = scalar_select %p38, %s40, %s31
      %p42 = scmp.ge.s32.totalorder %s41, 2
      %s43 = scalar_select %p42, 0, %s41
      %s44 = ssub.s32 %s31, %s43
      %p45 = scmp.eq.s32.totalorder %s44, 0
      %s47 = sadd.s32 %s46, 1
      %s48 = scalar_select %p45, %s46, %s47
      %p51 = pneg %p45
      %p52 = scmp.eq.s32.totalorder %s24, 3
      %p53 = por %p51, %p52
      %p54 = scmp.ne.s32.totalorder %s46, %s49
      %p55 = scmp.eq.s32.totalorder %s24, 0
      %p56 = por %p54, %p55
      %p57 = scmp.ne.s32.totalorder %s46, %s49
      %p58 = scmp.eq.s32.totalorder %s29, 3
      %p59 = por %p57, %p58
      %p60 = scmp.ne.s32.totalorder %s49, %s50
      %p61 = scmp.eq.s32.totalorder %s29, 0
      %p62 = por %p60, %p61
      %p63 = scmp.ne.s32.totalorder %s49, %s50
      %p64 = scmp.eq.s32.totalorder %s30, 3
      %p65 = por %p63, %p64
      %p67 = scmp.ne.s32.totalorder %s50, %s66
      %p68 = scmp.eq.s32.totalorder %s30, 0
      %p69 = por %p67, %p68
      %s71 = sadd.s32 %s70, 1
      %p74 = scmp.eq.s32.totalorder %s24, 3
      %p75 = scmp.ne.s32.totalorder %s70, %s72
      %p76 = scmp.eq.s32.totalorder %s24, 0
      %p77 = por %p75, %p76
      %p78 = scmp.ne.s32.totalorder %s70, %s72
      %p79 = scmp.eq.s32.totalorder %s29, 3
      %p80 = por %p78, %p79
      %p81 = scmp.ne.s32.totalorder %s72, %s73
      %p82 = scmp.eq.s32.totalorder %s29, 0
      %p83 = por %p81, %p82
      %p84 = scmp.ne.s32.totalorder %s72, %s73
      %p85 = scmp.eq.s32.totalorder %s30, 3
      %p86 = por %p84, %p85
      %p88 = scmp.ne.s32.totalorder %s73, %s87
      %p89 = scmp.eq.s32.totalorder %s30, 0
      %p90 = por %p88, %p89
      %s92 = sadd.s32 %s91, 1
      %p95 = scmp.eq.s32.totalorder %s24, 3
      %p96 = scmp.ne.s32.totalorder %s91, %s93
      %p97 = scmp.eq.s32.totalorder %s24, 0
      %p98 = por %p96, %p97
      %p99 = scmp.ne.s32.totalorder %s91, %s93
      %p100 = scmp.eq.s32.totalorder %s29, 3
      %p101 = por %p99, %p100
      %p102 = scmp.ne.s32.totalorder %s93, %s94
      %p103 = scmp.eq.s32.totalorder %s29, 0
      %p104 = por %p102, %p103
      %p105 = scmp.ne.s32.totalorder %s93, %s94
      %p106 = scmp.eq.s32.totalorder %s30, 3
      %p107 = por %p105, %p106
      %p109 = scmp.ne.s32.totalorder %s94, %s108
      %p110 = scmp.eq.s32.totalorder %s30, 0
      %p111 = por %p109, %p110
      %s113 = sadd.s32 %s112, 1
      %p116 = scmp.eq.s32.totalorder %s24, 3
      %p117 = scmp.ne.s32.totalorder %s112, %s114
      %p118 = scmp.eq.s32.totalorder %s24, 0
      %p119 = por %p117, %p118
      %p120 = scmp.ne.s32.totalorder %s112, %s114
      %p121 = scmp.eq.s32.totalorder %s29, 3
      %p122 = por %p120, %p121
      %p123 = scmp.ne.s32.totalorder %s114, %s115
      %p124 = scmp.eq.s32.totalorder %s29, 0
      %p125 = por %p123, %p124
      %p126 = scmp.ne.s32.totalorder %s114, %s115
      %p127 = scmp.eq.s32.totalorder %s30, 3
      %p128 = por %p126, %p127
      %p130 = scmp.ne.s32.totalorder %s115, %s129
      %p131 = scmp.eq.s32.totalorder %s30, 0
      %p132 = por %p130, %p131
      %s134 = sadd.s32 %s133, 1
      %p137 = scmp.eq.s32.totalorder %s24, 3
      %p138 = scmp.ne.s32.totalorder %s133, %s135
      %p139 = scmp.eq.s32.totalorder %s24, 0
      %p140 = por %p138, %p139
      %p141 = scmp.ne.s32.totalorder %s133, %s135
      %p142 = scmp.eq.s32.totalorder %s29, 3
      %p143 = por %p141, %p142
      %p144 = scmp.ne.s32.totalorder %s135, %s136
      %p145 = scmp.eq.s32.totalorder %s29, 0
      %p146 = por %p144, %p145
      %p147 = scmp.ne.s32.totalorder %s135, %s136
      %p148 = scmp.eq.s32.totalorder %s30, 3
      %p149 = por %p147, %p148
      %p151 = scmp.ne.s32.totalorder %s136, %s150
      %p152 = scmp.eq.s32.totalorder %s30, 0
      %p153 = por %p151, %p152
      %s155 = sadd.s32 %s154, 1
      %p158 = scmp.eq.s32.totalorder %s24, 3
      %p159 = scmp.ne.s32.totalorder %s154, %s156
      %p160 = scmp.eq.s32.totalorder %s24, 0
      %p161 = por %p159, %p160
      %p162 = scmp.ne.s32.totalorder %s154, %s156
      %p163 = scmp.eq.s32.totalorder %s29, 3
      %p164 = por %p162, %p163
      %p165 = scmp.ne.s32.totalorder %s156, %s157
      %p166 = scmp.eq.s32.totalorder %s29, 0
      %p167 = por %p165, %p166
      %p168 = scmp.ne.s32.totalorder %s156, %s157
      %p169 = scmp.eq.s32.totalorder %s30, 3
      %p170 = por %p168, %p169
      %p172 = scmp.ne.s32.totalorder %s157, %s171
      %p173 = scmp.eq.s32.totalorder %s30, 0
      %p174 = por %p172, %p173
      %s176 = sadd.s32 %s175, 1
      %p179 = scmp.eq.s32.totalorder %s24, 3
      %p180 = scmp.ne.s32.totalorder %s175, %s177
      %p181 = scmp.eq.s32.totalorder %s24, 0
      %p182 = por %p180, %p181
      %p183 = scmp.ne.s32.totalorder %s175, %s177
      %p184 = scmp.eq.s32.totalorder %s29, 3
      %p185 = por %p183, %p184
      %p186 = scmp.ne.s32.totalorder %s177, %s178
      %p187 = scmp.eq.s32.totalorder %s29, 0
      %p188 = por %p186, %p187
      %p189 = scmp.ne.s32.totalorder %s177, %s178
      %p190 = scmp.eq.s32.totalorder %s30, 3
      %p191 = por %p189, %p190
      %p193 = scmp.ne.s32.totalorder %s178, %s192
      %p194 = scmp.eq.s32.totalorder %s30, 0
      %p195 = por %p193, %p194
      %s197 = sadd.s32 %s196, 1
      %p200 = scmp.eq.s32.totalorder %s24, 3
      %p201 = scmp.ne.s32.totalorder %s196, %s198
      %p202 = scmp.eq.s32.totalorder %s24, 0
      %p203 = por %p201, %p202
      %p204 = scmp.ne.s32.totalorder %s196, %s198
      %p205 = scmp.eq.s32.totalorder %s29, 3
      %p206 = por %p204, %p205
      %p207 = scmp.ne.s32.totalorder %s198, %s199
      %p208 = scmp.eq.s32.totalorder %s29, 0
      %p209 = por %p207, %p208
      %p210 = scmp.ne.s32.totalorder %s198, %s199
      %p211 = scmp.eq.s32.totalorder %s30, 3
      %p212 = por %p210, %p211
      %p214 = scmp.ne.s32.totalorder %s199, %s213
      %p215 = scmp.eq.s32.totalorder %s30, 0
      %p216 = por %p214, %p215
      %s218 = sadd.s32 %s217, 1
      %p221 = scmp.eq.s32.totalorder %s24, 3
      %p222 = scmp.ne.s32.totalorder %s217, %s219
      %p223 = scmp.eq.s32.totalorder %s24, 0
      %p224 = por %p222, %p223
      %p225 = scmp.ne.s32.totalorder %s217, %s219
      %p226 = scmp.eq.s32.totalorder %s29, 3
      %p227 = por %p225, %p226
      %p228 = scmp.ne.s32.totalorder %s219, %s220
      %p229 = scmp.eq.s32.totalorder %s29, 0
      %p230 = por %p228, %p229
      %p231 = scmp.ne.s32.totalorder %s219, %s220
      %p232 = scmp.eq.s32.totalorder %s30, 3
      %p233 = por %p231, %p232
      %p235 = scmp.ne.s32.totalorder %s220, %s234
      %p236 = scmp.eq.s32.totalorder %s30, 0
      %p237 = por %p235, %p236
      %s239 = sadd.s32 %s238, 1
      %p242 = scmp.eq.s32.totalorder %s24, 3
      %p243 = scmp.ne.s32.totalorder %s238, %s240
      %p244 = scmp.eq.s32.totalorder %s24, 0
      %p245 = por %p243, %p244
      %p246 = scmp.ne.s32.totalorder %s238, %s240
      %p247 = scmp.eq.s32.totalorder %s29, 3
      %p248 = por %p246, %p247
      %p249 = scmp.ne.s32.totalorder %s240, %s241
      %p250 = scmp.eq.s32.totalorder %s29, 0
      %p251 = por %p249, %p250
      %p252 = scmp.ne.s32.totalorder %s240, %s241
      %p253 = scmp.eq.s32.totalorder %s30, 3
      %p254 = por %p252, %p253
      %p256 = scmp.ne.s32.totalorder %s241, %s255
      %p257 = scmp.eq.s32.totalorder %s30, 0
      %p258 = por %p256, %p257
      %s260 = sadd.s32 %s259, 1
      %p263 = scmp.eq.s32.totalorder %s24, 3
      %p264 = scmp.ne.s32.totalorder %s259, %s261
      %p265 = scmp.eq.s32.totalorder %s24, 0
      %p266 = por %p264, %p265
      %p267 = scmp.ne.s32.totalorder %s259, %s261
      %p268 = scmp.eq.s32.totalorder %s29, 3
      %p269 = por %p267, %p268
      %p270 = scmp.ne.s32.totalorder %s261, %s262
      %p271 = scmp.eq.s32.totalorder %s29, 0
      %p272 = por %p270, %p271
      %p273 = scmp.ne.s32.totalorder %s261, %s262
      %p274 = scmp.eq.s32.totalorder %s30, 3
      %p275 = por %p273, %p274
      %p277 = scmp.ne.s32.totalorder %s262, %s276
      %p278 = scmp.eq.s32.totalorder %s30, 0
      %p279 = por %p277, %p278
      %s281 = sadd.s32 %s280, 1
      %p284 = scmp.eq.s32.totalorder %s24, 3
      %p285 = scmp.ne.s32.totalorder %s280, %s282
      %p286 = scmp.eq.s32.totalorder %s24, 0
      %p287 = por %p285, %p286
      %p288 = scmp.ne.s32.totalorder %s280, %s282
      %p289 = scmp.eq.s32.totalorder %s29, 3
      %p290 = por %p288, %p289
      %p291 = scmp.ne.s32.totalorder %s282, %s283
      %p292 = scmp.eq.s32.totalorder %s29, 0
      %p293 = por %p291, %p292
      %p294 = scmp.ne.s32.totalorder %s282, %s283
      %p295 = scmp.eq.s32.totalorder %s30, 3
      %p296 = por %p294, %p295
      %p298 = scmp.ne.s32.totalorder %s283, %s297
      %p299 = scmp.eq.s32.totalorder %s30, 0
      %p300 = por %p298, %p299
      %s301 = ssub.s32 %s31, %s43
      %s302 = ssub.s32 %s32, %s39
      %s303 = sor.u32 %s301, %s302
      %p304 = scmp.eq.s32.totalorder %s303, 0
      %s306 = sadd.s32 %s305, 1
      %s307 = scalar_select %p304, %s305, %s306
      %p310 = pneg %p304
      %p311 = scmp.eq.s32.totalorder %s24, 3
      %p312 = por %p310, %p311
      %p313 = scmp.ne.s32.totalorder %s305, %s308
      %p314 = scmp.eq.s32.totalorder %s24, 0
      %p315 = por %p313, %p314
      %p316 = scmp.ne.s32.totalorder %s305, %s308
      %p317 = scmp.eq.s32.totalorder %s29, 3
      %p318 = por %p316, %p317
      %p319 = scmp.ne.s32.totalorder %s308, %s309
      %p320 = scmp.eq.s32.totalorder %s29, 0
      %p321 = por %p319, %p320
      %p322 = scmp.ne.s32.totalorder %s308, %s309
      %p323 = scmp.eq.s32.totalorder %s30, 3
      %p324 = por %p322, %p323
      %p326 = scmp.ne.s32.totalorder %s309, %s325
      %p327 = scmp.eq.s32.totalorder %s30, 0
      %p328 = por %p326, %p327
      %p329 = scmp.le.s32.totalorder 1, %s24
      %p330 = scmp.lt.s32.totalorder %s24, 5
      %p331 = pnand %p329, %p330
      %p332 = pneg %p331
      // Predicated region
      $region9: #{tpu_custom_call.1} parent=5 // pred_check
        _
      $region10: #{tpu_custom_call.1} parent=5 // pred_check_branch
        %334 = sbr.rel (%p331) target = $region12
      $region11: #{tpu_custom_call.1} parent=5 // pred_region
        %s335 = ssub.s32 %s24, 1
        // Predicated region
        $region13: #{tpu_custom_call.1} parent=11 // pred_check
          %p336 = pneg %p83
        $region14: #{tpu_custom_call.1} parent=11 // pred_check_branch
          %338 = sbr.rel (%p336) target = $region16
        $region15: #{tpu_custom_call.1} parent=11 // pred_region
          _
        $region16: #{tpu_custom_call.1} parent=11 // pred_fallthru
          _
        // Predicated region
        $region17: #{tpu_custom_call.1} parent=11 // pred_check
          %p339 = pneg %p104
        $region18: #{tpu_custom_call.1} parent=11 // pred_check_branch
          %341 = sbr.rel (%p339) target = $region20
        $region19: #{tpu_custom_call.1} parent=11 // pred_region
          _
        $region20: #{tpu_custom_call.1} parent=11 // pred_fallthru
          _
        // Predicated region
        $region21: #{tpu_custom_call.1} parent=11 // pred_check
          %p342 = pneg %p125
        $region22: #{tpu_custom_call.1} parent=11 // pred_check_branch
          %344 = sbr.rel (%p342) target = $region24
        $region23: #{tpu_custom_call.1} parent=11 // pred_region
          _
        $region24: #{tpu_custom_call.1} parent=11 // pred_fallthru
          _
        // Predicated region
        $region25: #{tpu_custom_call.1} parent=11 // pred_check
          %p345 = pneg %p146
        $region26: #{tpu_custom_call.1} parent=11 // pred_check_branch
          %347 = sbr.rel (%p345) target = $region28
        $region27: #{tpu_custom_call.1} parent=11 // pred_region
          _
        $region28: #{tpu_custom_call.1} parent=11 // pred_fallthru
          _
        // Predicated region
        $region29: #{tpu_custom_call.1} parent=11 // pred_check
          %p348 = pneg %p167
        $region30: #{tpu_custom_call.1} parent=11 // pred_check_branch
          %350 = sbr.rel (%p348) target = $region32
        $region31: #{tpu_custom_call.1} parent=11 // pred_region
          _
        $region32: #{tpu_custom_call.1} parent=11 // pred_fallthru
          _
        // Predicated region
        $region33: #{tpu_custom_call.1} parent=11 // pred_check
          %p351 = pneg %p188
        $region34: #{tpu_custom_call.1} parent=11 // pred_check_branch
          %353 = sbr.rel (%p351) target = $region36
        $region35: #{tpu_custom_call.1} parent=11 // pred_region
          _
        $region36: #{tpu_custom_call.1} parent=11 // pred_fallthru
          _
        // Predicated region
        $region37: #{tpu_custom_call.1} parent=11 // pred_check
          %p354 = pneg %p209
        $region38: #{tpu_custom_call.1} parent=11 // pred_check_branch
          %356 = sbr.rel (%p354) target = $region40
        $region39: #{tpu_custom_call.1} parent=11 // pred_region
          _
        $region40: #{tpu_custom_call.1} parent=11 // pred_fallthru
          _
        // Predicated region
        $region41: #{tpu_custom_call.1} parent=11 // pred_check
          %p357 = pneg %p230
        $region42: #{tpu_custom_call.1} parent=11 // pred_check_branch
          %359 = sbr.rel (%p357) target = $region44
        $region43: #{tpu_custom_call.1} parent=11 // pred_region
          _
        $region44: #{tpu_custom_call.1} parent=11 // pred_fallthru
          _
        // Predicated region
        $region45: #{tpu_custom_call.1} parent=11 // pred_check
          %p360 = pneg %p251
        $region46: #{tpu_custom_call.1} parent=11 // pred_check_branch
          %362 = sbr.rel (%p360) target = $region48
        $region47: #{tpu_custom_call.1} parent=11 // pred_region
          _
        $region48: #{tpu_custom_call.1} parent=11 // pred_fallthru
          _
        // Predicated region
        $region49: #{tpu_custom_call.1} parent=11 // pred_check
          %p363 = pneg %p272
        $region50: #{tpu_custom_call.1} parent=11 // pred_check_branch
          %365 = sbr.rel (%p363) target = $region52
        $region51: #{tpu_custom_call.1} parent=11 // pred_region
          _
        $region52: #{tpu_custom_call.1} parent=11 // pred_fallthru
          _
        // Predicated region
        $region53: #{tpu_custom_call.1} parent=11 // pred_check
          %p366 = pneg %p293
        $region54: #{tpu_custom_call.1} parent=11 // pred_check_branch
          %368 = sbr.rel (%p366) target = $region56
        $region55: #{tpu_custom_call.1} parent=11 // pred_region
          _
        $region56: #{tpu_custom_call.1} parent=11 // pred_fallthru
          _
      $region12: #{tpu_custom_call.1} parent=5 // pred_fallthru
        _
      %p369 = scmp.lt.s32.totalorder %s24, 4
      // Predicated region
      $region57: #{tpu_custom_call.1} parent=5 // pred_check
        %p370 = pneg %p369
      $region58: #{tpu_custom_call.1} parent=5 // pred_check_branch
        %372 = sbr.rel (%p370) target = $region60
      $region59: #{tpu_custom_call.1} parent=5 // pred_region
        // Predicated region
        $region61: #{tpu_custom_call.1} parent=59 // pred_check
          %p373 = pneg %p56
        $region62: #{tpu_custom_call.1} parent=59 // pred_check_branch
          %375 = sbr.rel (%p373) target = $region64
        $region63: #{tpu_custom_call.1} parent=59 // pred_region
          %s376 = sand.u32 %s46, 1
          %s377 = scalar_lea.sflag [#allocation3], %s376
          %s378 = sand.u32 %s46, 1
          %s379 = smul.addr %s378, 8
          %s380 = scalar_lea.vmem [#allocation2], %s379
          %s382 = ssub.s32 128, 128
          %383 = vsyncadd %s377, %s382
          %s384 = smul.addr %s31, 2
          %s385 = smul.addr %s384, 64
          %s386 = scalar_lea.hbm %s0, %s385
          %s388 = sshll.u32 %s380, 4
          %s389 = int_to_ptr.vmem [resolvable:$true] %s388
          %391 = dma.hbm_to_vmem [thread:$0]  %s386, 128, %s389, %s377
        $region64: #{tpu_custom_call.1} parent=59 // pred_fallthru
          _
      $region60: #{tpu_custom_call.1} parent=5 // pred_fallthru
        _
      %p392 = scmp.le.s32.totalorder 1, %s24
      %p393 = scmp.lt.s32.totalorder %s24, 5
      %p394 = pnand %p392, %p393
      %p395 = pneg %p394
      // Predicated region
      $region65: #{tpu_custom_call.1} parent=5 // pred_check
        _
      $region66: #{tpu_custom_call.1} parent=5 // pred_check_branch
        %397 = sbr.rel (%p394) target = $region68
      $region67: #{tpu_custom_call.1} parent=5 // pred_region
        %s398 = ssub.s32 %s24, 1
        %s399 = sand.u32 %s49, 1
        %s400 = scalar_lea.sflag [#allocation3], %s399
        %s401 = sand.u32 %s49, 1
        %s402 = smul.addr %s401, 8
        %s403 = scalar_lea.vmem [#allocation2], %s402
        // Predicated region
        $region69: #{tpu_custom_call.1} parent=67 // pred_check
          %p404 = pneg %p62
        $region70: #{tpu_custom_call.1} parent=67 // pred_check_branch
          %406 = sbr.rel (%p404) target = $region72
        $region71: #{tpu_custom_call.1} parent=67 // pred_region
          %407 = dma.done %s400, 128
        $region72: #{tpu_custom_call.1} parent=67 // pred_fallthru
          _
        %s408 = sand.u32 %s49, 1
        %s409 = scalar_lea.sflag [#allocation3], %s408
        %s410 = sand.u32 %s49, 1
        %s411 = smul.addr %s410, 8
        %s412 = scalar_lea.vmem [#allocation2], %s411
        %p413 = pneg %p62
        %p414 = pneg %p59
        %p415 = pneg %p83
        %p416 = pneg %p80
        %p417 = pneg %p104
        %p418 = pneg %p101
        %p419 = pneg %p125
        %p420 = pneg %p122
        %p421 = pneg %p146
        %p422 = pneg %p143
        %p423 = pneg %p167
        %p424 = pneg %p164
        %p425 = pneg %p188
        %p426 = pneg %p185
        %p427 = pneg %p209
        %p428 = pneg %p206
        %p429 = pneg %p230
        %p430 = pneg %p227
        %p431 = pneg %p251
        %p432 = pneg %p248
        %p433 = pneg %p272
        %p434 = pneg %p269
        %p435 = pneg %p293
        %p436 = pneg %p290
        %p437 = pneg %p321
        %p438 = pneg %p318
        %s439 = sand.u32 %s308, 1
        %s440 = scalar_lea.sflag [#allocation4], %s439
        %s441 = sand.u32 %s308, 1
        %s442 = smul.addr %s441, 4
        %s443 = scalar_lea.vmem [#allocation5], %s442
        %v444 = vld [vmem:[%s403] sm:$0xff]
        %s445 = smul.u32 %s34, 128
        %s446 = sshra.s32 %s445, 7
        %s447 = sand.u32 %s445, 127
        %s448 = smul.addr %s446, 4
        %s449 = scalar_lea.vmem %s403, %s448 [#allocation2]
        %v450 = vld [vmem:[%s449] sm:$0xf]
        %v451 = vld [vmem:[%s5] sm:$0x3]
        %v452 = vld [vmem:[%s6] sm:$0x3]
        %454 = vset.pattern.permute.xlu0 0
        %455 = vperm.xlu0 %454, %v452
        %v456 = vpop.permute.xlu0 %455
        %v459 = vcombine.high %v444, %v444
        %vm460 = vcmask 31744
        %v462 = vsel %vm460, %v451, 0
        %vm464 = vcmask 1043456
        %v465 = vsel %vm464, %v444, 0
        %v467 = vsel %vm464, %v459, 0
        %469 = vmatprep.subr.mxu0 %v467
        %470 = vmatpush1.msra.mxu0 %v465
        %471 = vmatprep.subr.mxu0 0.0
        %472 = vmatpush1.msra.mxu0 0.0
        %473 = vmatprep.subr.mxu0 0.0
        %474 = vmatpush1.msra.mxu0 0.0
        %475 = vmatprep.subr.mxu0 0.0
        %476 = vmatpush1.msra.mxu0 0.0
        %477 = vmatprep.subr.mxu0 0.0
        %478 = vmatpush1.msra.mxu0 0.0
        %479 = vmatprep.subr.mxu0 0.0
        %480 = vmatpush1.msra.mxu0 0.0
        %481 = vmatprep.subr.mxu0 0.0
        %482 = vmatpush1.msra.mxu0 0.0
        %483 = vmatprep.subr.mxu0 0.0
        %484 = vmatpush1.msra.mxu0 0.0
        %485 = vmatprep.subr.mxu0 0.0
        %486 = vmatpush1.msra.mxu0 0.0
        %487 = vmatprep.subr.mxu0 0.0
        %488 = vmatpush1.msra.mxu0 0.0
        %489 = vmatprep.subr.mxu0 0.0
        %490 = vmatpush1.msra.mxu0 0.0
        %491 = vmatprep.subr.mxu0 0.0
        %492 = vmatpush1.msra.mxu0 0.0
        %493 = vmatprep.subr.mxu0 0.0
        %494 = vmatpush1.msra.mxu0 0.0
        %495 = vmatprep.subr.mxu0 0.0
        %496 = vmatpush1.msra.mxu0 0.0
        %497 = vmatprep.subr.mxu0 0.0
        %498 = vmatpush1.msra.mxu0 0.0
        %499 = vmatprep.subr.mxu0 0.0
        %500 = vmatpush1.msra.mxu0 0.0
        %501 = vmatprep.subr.mxu0 0.0
        %502 = vmatpush1.msra.mxu0 0.0
        %503 = vmatprep.subr.mxu0 0.0
        %504 = vmatpush1.msra.mxu0 0.0
        %505 = vmatprep.subr.mxu0 0.0
        %506 = vmatpush1.msra.mxu0 0.0
        %507 = vmatprep.subr.mxu0 0.0
        %508 = vmatpush1.msra.mxu0 0.0
        %509 = vmatprep.subr.mxu0 0.0
        %510 = vmatpush1.msra.mxu0 0.0
        %511 = vmatprep.subr.mxu0 0.0
        %512 = vmatpush1.msra.mxu0 0.0
        %513 = vmatprep.subr.mxu0 0.0
        %514 = vmatpush1.msra.mxu0 0.0
        %515 = vmatprep.subr.mxu0 0.0
        %516 = vmatpush1.msra.mxu0 0.0
        %517 = vmatprep.subr.mxu0 0.0
        %518 = vmatpush1.msra.mxu0 0.0
        %519 = vmatprep.subr.mxu0 0.0
        %520 = vmatpush1.msra.mxu0 0.0
        %521 = vmatprep.subr.mxu0 0.0
        %522 = vmatpush1.msra.mxu0 0.0
        %523 = vmatprep.subr.mxu0 0.0
        %524 = vmatpush1.msra.mxu0 0.0
        %525 = vmatprep.subr.mxu0 0.0
        %526 = vmatpush1.msra.mxu0 0.0
        %527 = vmatprep.subr.mxu0 0.0
        %528 = vmatpush1.msra.mxu0 0.0
        %529 = vmatprep.subr.mxu0 0.0
        %530 = vmatpush1.msra.mxu0 0.0
        %531 = vmatprep.subr.mxu0 0.0
        %532 = vmatpush1.msra.mxu0 0.0
        %533 = vmatprep.mubr.f32.mxu0 0.0
        %534 = vmatmul.mubr.f32.gmra.mrb[0].mxu0 %v462
        %v535 = vpop.f32.mrb[0].mxu0
        %v536 = vadd.f32 %v456, %v535
        %v537 = vpop.f32.mrb[0].mxu0
        %v538 = vadd.f32 %v456, %v537
        %539 = vdwg.mxu0
        %v540 = vld [vmem:[%s7] sm:$0x3]
        %v541 = vld [vmem:[%s8] sm:$0x3]
        %543 = vset.pattern.permute.xlu0 0
        %544 = vperm.xlu0 %543, %v541
        %v545 = vpop.permute.xlu0 %544
        %vm547 = vcmask 15360
        %v549 = vsel %vm547, %v540, 0
        %vm551 = vcmask 1041408
        %v553 = vsel %vm551, %v536, 0
        %v556 = vsel %vm551, %v538, 0
        %558 = vmatprep.subr.mxu0 %v556
        %559 = vmatpush1.msra.mxu0 %v553
        %560 = vmatprep.subr.mxu0 0.0
        %561 = vmatpush1.msra.mxu0 0.0
        %562 = vmatprep.subr.mxu0 0.0
        %563 = vmatpush1.msra.mxu0 0.0
        %564 = vmatprep.subr.mxu0 0.0
        %565 = vmatpush1.msra.mxu0 0.0
        %566 = vmatprep.subr.mxu0 0.0
        %567 = vmatpush1.msra.mxu0 0.0
        %568 = vmatprep.subr.mxu0 0.0
        %569 = vmatpush1.msra.mxu0 0.0
        %570 = vmatprep.subr.mxu0 0.0
        %571 = vmatpush1.msra.mxu0 0.0
        %572 = vmatprep.subr.mxu0 0.0
        %573 = vmatpush1.msra.mxu0 0.0
        %574 = vmatprep.subr.mxu0 0.0
        %575 = vmatpush1.msra.mxu0 0.0
        %576 = vmatprep.subr.mxu0 0.0
        %577 = vmatpush1.msra.mxu0 0.0
        %578 = vmatprep.subr.mxu0 0.0
        %579 = vmatpush1.msra.mxu0 0.0
        %580 = vmatprep.subr.mxu0 0.0
        %581 = vmatpush1.msra.mxu0 0.0
        %582 = vmatprep.subr.mxu0 0.0
        %583 = vmatpush1.msra.mxu0 0.0
        %584 = vmatprep.subr.mxu0 0.0
        %585 = vmatpush1.msra.mxu0 0.0
        %586 = vmatprep.subr.mxu0 0.0
        %587 = vmatpush1.msra.mxu0 0.0
        %588 = vmatprep.subr.mxu0 0.0
        %589 = vmatpush1.msra.mxu0 0.0
        %590 = vmatprep.subr.mxu0 0.0
        %591 = vmatpush1.msra.mxu0 0.0
        %592 = vmatprep.subr.mxu0 0.0
        %593 = vmatpush1.msra.mxu0 0.0
        %594 = vmatprep.subr.mxu0 0.0
        %595 = vmatpush1.msra.mxu0 0.0
        %596 = vmatprep.subr.mxu0 0.0
        %597 = vmatpush1.msra.mxu0 0.0
        %598 = vmatprep.subr.mxu0 0.0
        %599 = vmatpush1.msra.mxu0 0.0
        %600 = vmatprep.subr.mxu0 0.0
        %601 = vmatpush1.msra.mxu0 0.0
        %602 = vmatprep.subr.mxu0 0.0
        %603 = vmatpush1.msra.mxu0 0.0
        %604 = vmatprep.subr.mxu0 0.0
        %605 = vmatpush1.msra.mxu0 0.0
        %606 = vmatprep.subr.mxu0 0.0
        %607 = vmatpush1.msra.mxu0 0.0
        %608 = vmatprep.subr.mxu0 0.0
        %609 = vmatpush1.msra.mxu0 0.0
        %610 = vmatprep.subr.mxu0 0.0
        %611 = vmatpush1.msra.mxu0 0.0
        %612 = vmatprep.subr.mxu0 0.0
        %613 = vmatpush1.msra.mxu0 0.0
        %614 = vmatprep.subr.mxu0 0.0
        %615 = vmatpush1.msra.mxu0 0.0
        %616 = vmatprep.subr.mxu0 0.0
        %617 = vmatpush1.msra.mxu0 0.0
        %618 = vmatprep.subr.mxu0 0.0
        %619 = vmatpush1.msra.mxu0 0.0
        %620 = vmatprep.subr.mxu0 0.0
        %621 = vmatpush1.msra.mxu0 0.0
        %622 = vmatprep.mubr.f32.mxu0 0.0
        %623 = vmatmul.mubr.f32.gmra.mrb[0].mxu0 %v549
        %v624 = vpop.f32.mrb[0].mxu0
        %v625 = vadd.f32 %v545, %v624
        %v626 = vpop.f32.mrb[0].mxu0
        %v627 = vadd.f32 %v545, %v626
        %628 = vdwg.mxu0
        %v629 = vld [vmem:[%s3] sm:$0x3]
        %v630 = vld [vmem:[%s4] sm:$0x3]
        %632 = vset.pattern.permute.xlu0 0
        %633 = vperm.xlu0 %632, %v630
        %v634 = vpop.permute.xlu0 %633
        %v637 = vsel %vm460, %v629, 0
        %v640 = vsel %vm464, %v450, 0
        %642 = vmatprep.subr.mxu0 0.0
        %643 = vmatpush1.msra.mxu0 %v640
        %644 = vmatprep.subr.mxu0 0.0
        %645 = vmatpush1.msra.mxu0 0.0
        %646 = vmatprep.subr.mxu0 0.0
        %647 = vmatpush1.msra.mxu0 0.0
        %648 = vmatprep.subr.mxu0 0.0
        %649 = vmatpush1.msra.mxu0 0.0
        %650 = vmatprep.subr.mxu0 0.0
        %651 = vmatpush1.msra.mxu0 0.0
        %652 = vmatprep.subr.mxu0 0.0
        %653 = vmatpush1.msra.mxu0 0.0
        %654 = vmatprep.subr.mxu0 0.0
        %655 = vmatpush1.msra.mxu0 0.0
        %656 = vmatprep.subr.mxu0 0.0
        %657 = vmatpush1.msra.mxu0 0.0
        %658 = vmatprep.subr.mxu0 0.0
        %659 = vmatpush1.msra.mxu0 0.0
        %660 = vmatprep.subr.mxu0 0.0
        %661 = vmatpush1.msra.mxu0 0.0
        %662 = vmatprep.subr.mxu0 0.0
        %663 = vmatpush1.msra.mxu0 0.0
        %664 = vmatprep.subr.mxu0 0.0
        %665 = vmatpush1.msra.mxu0 0.0
        %666 = vmatprep.subr.mxu0 0.0
        %667 = vmatpush1.msra.mxu0 0.0
        %668 = vmatprep.subr.mxu0 0.0
        %669 = vmatpush1.msra.mxu0 0.0
        %670 = vmatprep.subr.mxu0 0.0
        %671 = vmatpush1.msra.mxu0 0.0
        %672 = vmatprep.subr.mxu0 0.0
        %673 = vmatpush1.msra.mxu0 0.0
        %674 = vmatprep.subr.mxu0 0.0
        %675 = vmatpush1.msra.mxu0 0.0
        %676 = vmatprep.subr.mxu0 0.0
        %677 = vmatpush1.msra.mxu0 0.0
        %678 = vmatprep.subr.mxu0 0.0
        %679 = vmatpush1.msra.mxu0 0.0
        %680 = vmatprep.subr.mxu0 0.0
        %681 = vmatpush1.msra.mxu0 0.0
        %682 = vmatprep.subr.mxu0 0.0
        %683 = vmatpush1.msra.mxu0 0.0
        %684 = vmatprep.subr.mxu0 0.0
        %685 = vmatpush1.msra.mxu0 0.0
        %686 = vmatprep.subr.mxu0 0.0
        %687 = vmatpush1.msra.mxu0 0.0
        %688 = vmatprep.subr.mxu0 0.0
        %689 = vmatpush1.msra.mxu0 0.0
        %690 = vmatprep.subr.mxu0 0.0
        %691 = vmatpush1.msra.mxu0 0.0
        %692 = vmatprep.subr.mxu0 0.0
        %693 = vmatpush1.msra.mxu0 0.0
        %694 = vmatprep.subr.mxu0 0.0
        %695 = vmatpush1.msra.mxu0 0.0
        %696 = vmatprep.subr.mxu0 0.0
        %697 = vmatpush1.msra.mxu0 0.0
        %698 = vmatprep.subr.mxu0 0.0
        %699 = vmatpush1.msra.mxu0 0.0
        %700 = vmatprep.subr.mxu0 0.0
        %701 = vmatpush1.msra.mxu0 0.0
        %702 = vmatprep.subr.mxu0 0.0
        %703 = vmatpush1.msra.mxu0 0.0
        %704 = vmatprep.subr.mxu0 0.0
        %705 = vmatpush1.msra.mxu0 0.0
        %706 = vmatprep.mubr.f32.mxu0 0.0
        %707 = vmatmul.mubr.f32.gmra.mrb[0].mxu0 %v637
        %v708 = vpop.f32.mrb[0].mxu0
        %v709 = vadd.f32 %v634, %v708
        %v710 = vpop.f32.mrb[0].mxu0
        %711 = vdwg.mxu0
        %v712 = vmul.f32 %v709, 0.70710677
        %v713 = vld [vmem:[%s1] sm:$0x3]
        %v714 = vld [vmem:[%s2] sm:$0x3]
        %716 = vset.pattern.permute.xlu0 0
        %717 = vperm.xlu0 %716, %v714
        %v718 = vpop.permute.xlu0 %717
        %v721 = vsel %vm460, %v713, 0
        %723 = vmatprep.subr.mxu0 0.0
        %724 = vmatpush1.msra.mxu0 %v640
        %725 = vmatprep.subr.mxu0 0.0
        %726 = vmatpush1.msra.mxu0 0.0
        %727 = vmatprep.subr.mxu0 0.0
        %728 = vmatpush1.msra.mxu0 0.0
        %729 = vmatprep.subr.mxu0 0.0
        %730 = vmatpush1.msra.mxu0 0.0
        %731 = vmatprep.subr.mxu0 0.0
        %732 = vmatpush1.msra.mxu0 0.0
        %733 = vmatprep.subr.mxu0 0.0
        %734 = vmatpush1.msra.mxu0 0.0
        %735 = vmatprep.subr.mxu0 0.0
        %736 = vmatpush1.msra.mxu0 0.0
        %737 = vmatprep.subr.mxu0 0.0
        %738 = vmatpush1.msra.mxu0 0.0
        %739 = vmatprep.subr.mxu0 0.0
        %740 = vmatpush1.msra.mxu0 0.0
        %741 = vmatprep.subr.mxu0 0.0
        %742 = vmatpush1.msra.mxu0 0.0
        %743 = vmatprep.subr.mxu0 0.0
        %744 = vmatpush1.msra.mxu0 0.0
        %745 = vmatprep.subr.mxu0 0.0
        %746 = vmatpush1.msra.mxu0 0.0
        %747 = vmatprep.subr.mxu0 0.0
        %748 = vmatpush1.msra.mxu0 0.0
        %749 = vmatprep.subr.mxu0 0.0
        %750 = vmatpush1.msra.mxu0 0.0
        %751 = vmatprep.subr.mxu0 0.0
        %752 = vmatpush1.msra.mxu0 0.0
        %753 = vmatprep.subr.mxu0 0.0
        %754 = vmatpush1.msra.mxu0 0.0
        %755 = vmatprep.subr.mxu0 0.0
        %756 = vmatpush1.msra.mxu0 0.0
        %757 = vmatprep.subr.mxu0 0.0
        %758 = vmatpush1.msra.mxu0 0.0
        %759 = vmatprep.subr.mxu0 0.0
        %760 = vmatpush1.msra.mxu0 0.0
        %761 = vmatprep.subr.mxu0 0.0
        %762 = vmatpush1.msra.mxu0 0.0
        %763 = vmatprep.subr.mxu0 0.0
        %764 = vmatpush1.msra.mxu0 0.0
        %765 = vmatprep.subr.mxu0 0.0
        %766 = vmatpush1.msra.mxu0 0.0
        %767 = vmatprep.subr.mxu0 0.0
        %768 = vmatpush1.msra.mxu0 0.0
        %769 = vmatprep.subr.mxu0 0.0
        %770 = vmatpush1.msra.mxu0 0.0
        %771 = vmatprep.subr.mxu0 0.0
        %772 = vmatpush1.msra.mxu0 0.0
        %773 = vmatprep.subr.mxu0 0.0
        %774 = vmatpush1.msra.mxu0 0.0
        %775 = vmatprep.subr.mxu0 0.0
        %776 = vmatpush1.msra.mxu0 0.0
        %777 = vmatprep.subr.mxu0 0.0
        %778 = vmatpush1.msra.mxu0 0.0
        %779 = vmatprep.subr.mxu0 0.0
        %780 = vmatpush1.msra.mxu0 0.0
        %781 = vmatprep.subr.mxu0 0.0
        %782 = vmatpush1.msra.mxu0 0.0
        %783 = vmatprep.subr.mxu0 0.0
        %784 = vmatpush1.msra.mxu0 0.0
        %785 = vmatprep.subr.mxu0 0.0
        %786 = vmatpush1.msra.mxu0 0.0
        %787 = vmatprep.mubr.f32.mxu0 0.0
        %788 = vmatmul.mubr.f32.gmra.mrb[0].mxu0 %v721
        %v789 = vpop.f32.mrb[0].mxu0
        %v790 = vadd.f32 %v718, %v789
        %v791 = vpop.f32.mrb[0].mxu0
        %792 = vdwg.mxu0
        %793 = vxpose.xlu0.b32.start [1/16] %v712, 128
        %794 = vxpose.xlu0.b32.cont [2/16] 0.0, 128
        %795 = vxpose.xlu0.b32.cont [3/16] 0.0, 128
        %796 = vxpose.xlu0.b32.cont [4/16] 0.0, 128
        %797 = vxpose.xlu0.b32.cont [5/16] 0.0, 128
        %798 = vxpose.xlu0.b32.cont [6/16] 0.0, 128
        %799 = vxpose.xlu0.b32.cont [7/16] 0.0, 128
        %800 = vxpose.xlu0.b32.cont [8/16] 0.0, 128
        %801 = vxpose.xlu0.b32.cont [9/16] 0.0, 128
        %802 = vxpose.xlu0.b32.cont [10/16] 0.0, 128
        %803 = vxpose.xlu0.b32.cont [11/16] 0.0, 128
        %804 = vxpose.xlu0.b32.cont [12/16] 0.0, 128
        %805 = vxpose.xlu0.b32.cont [13/16] 0.0, 128
        %806 = vxpose.xlu0.b32.cont [14/16] 0.0, 128
        %807 = vxpose.xlu0.b32.cont [15/16] 0.0, 128
        %808 = vxpose.xlu0.b32.end [16/16] 0.0, 128
        %v809 = vpop.trf.xlu0
        %v810 = vpop.trf.xlu0
        %v811 = vpop.trf.xlu0
        %v812 = vpop.trf.xlu0
        %v813 = vpop.trf.xlu0
        %v814 = vpop.trf.xlu0
        %v815 = vpop.trf.xlu0
        %v816 = vpop.trf.xlu0
        %v817 = vpop.trf.xlu0
        %v818 = vpop.trf.xlu0
        %v819 = vpop.trf.xlu0
        %v820 = vpop.trf.xlu0
        %v821 = vpop.trf.xlu0
        %v822 = vpop.trf.xlu0
        %v823 = vpop.trf.xlu0
        %v824 = vpop.trf.xlu0
        %v826 = vsel %vm547, %v809, 0
        %v829 = vsel %vm547, %v810, 0
        %v832 = vsel %vm547, %v811, 0
        %v835 = vsel %vm547, %v812, 0
        %v838 = vsel %vm547, %v813, 0
        %v841 = vsel %vm547, %v814, 0
        %v844 = vsel %vm547, %v815, 0
        %v847 = vsel %vm547, %v816, 0
        %v850 = vsel %vm547, %v817, 0
        %v853 = vsel %vm547, %v818, 0
        %v856 = vsel %vm547, %v819, 0
        %v859 = vsel %vm547, %v820, 0
        %v862 = vsel %vm547, %v821, 0
        %v865 = vsel %vm547, %v822, 0
        %v868 = vsel %vm547, %v823, 0
        %v871 = vsel %vm547, %v824, 0
        %873 = vmatprep.subr.mxu0 %v556
        %874 = vmatpush1.msra.mxu0 %v553
        %875 = vmatprep.subr.mxu0 0.0
        %876 = vmatpush1.msra.mxu0 0.0
        %877 = vmatprep.subr.mxu0 0.0
        %878 = vmatpush1.msra.mxu0 0.0
        %879 = vmatprep.subr.mxu0 0.0
        %880 = vmatpush1.msra.mxu0 0.0
        %881 = vmatprep.subr.mxu0 0.0
        %882 = vmatpush1.msra.mxu0 0.0
        %883 = vmatprep.subr.mxu0 0.0
        %884 = vmatpush1.msra.mxu0 0.0
        %885 = vmatprep.subr.mxu0 0.0
        %886 = vmatpush1.msra.mxu0 0.0
        %887 = vmatprep.subr.mxu0 0.0
        %888 = vmatpush1.msra.mxu0 0.0
        %889 = vmatprep.subr.mxu0 0.0
        %890 = vmatpush1.msra.mxu0 0.0
        %891 = vmatprep.subr.mxu0 0.0
        %892 = vmatpush1.msra.mxu0 0.0
        %893 = vmatprep.subr.mxu0 0.0
        %894 = vmatpush1.msra.mxu0 0.0
        %895 = vmatprep.subr.mxu0 0.0
        %896 = vmatpush1.msra.mxu0 0.0
        %897 = vmatprep.subr.mxu0 0.0
        %898 = vmatpush1.msra.mxu0 0.0
        %899 = vmatprep.subr.mxu0 0.0
        %900 = vmatpush1.msra.mxu0 0.0
        %901 = vmatprep.subr.mxu0 0.0
        %902 = vmatpush1.msra.mxu0 0.0
        %903 = vmatprep.subr.mxu0 0.0
        %904 = vmatpush1.msra.mxu0 0.0
        %905 = vmatprep.subr.mxu0 0.0
        %906 = vmatpush1.msra.mxu0 0.0
        %907 = vmatprep.subr.mxu0 0.0
        %908 = vmatpush1.msra.mxu0 0.0
        %909 = vmatprep.subr.mxu0 0.0
        %910 = vmatpush1.msra.mxu0 0.0
        %911 = vmatprep.subr.mxu0 0.0
        %912 = vmatpush1.msra.mxu0 0.0
        %913 = vmatprep.subr.mxu0 0.0
        %914 = vmatpush1.msra.mxu0 0.0
        %915 = vmatprep.subr.mxu0 0.0
        %916 = vmatpush1.msra.mxu0 0.0
        %917 = vmatprep.subr.mxu0 0.0
        %918 = vmatpush1.msra.mxu0 0.0
        %919 = vmatprep.subr.mxu0 0.0
        %920 = vmatpush1.msra.mxu0 0.0
        %921 = vmatprep.subr.mxu0 0.0
        %922 = vmatpush1.msra.mxu0 0.0
        %923 = vmatprep.subr.mxu0 0.0
        %924 = vmatpush1.msra.mxu0 0.0
        %925 = vmatprep.subr.mxu0 0.0
        %926 = vmatpush1.msra.mxu0 0.0
        %927 = vmatprep.subr.mxu0 0.0
        %928 = vmatpush1.msra.mxu0 0.0
        %929 = vmatprep.subr.mxu0 0.0
        %930 = vmatpush1.msra.mxu0 0.0
        %931 = vmatprep.subr.mxu0 0.0
        %932 = vmatpush1.msra.mxu0 0.0
        %933 = vmatprep.subr.mxu0 0.0
        %934 = vmatpush1.msra.mxu0 0.0
        %935 = vmatprep.subr.mxu0 0.0
        %936 = vmatpush1.msra.mxu0 0.0
        %937 = vmatprep.mubr.f32.mxu0 0.0
        %938 = vmatmul.mubr.f32.gmra.mrb[0].mxu0 %v826
        %v939 = vpop.f32.mrb[0].mxu0
        %v940 = vadd.f32 0.0, %v939
        %v941 = vpop.f32.mrb[0].mxu0
        %v942 = vadd.f32 0.0, %v941
        %943 = vmatprep.mubr.f32.mxu0 0.0
        %944 = vmatmul.mubr.f32.gmra.mrb[0].mxu0 %v829
        %v945 = vpop.f32.mrb[0].mxu0
        %v946 = vadd.f32 0.0, %v945
        %v947 = vpop.f32.mrb[0].mxu0
        %v948 = vadd.f32 0.0, %v947
        %949 = vmatprep.mubr.f32.mxu0 0.0
        %950 = vmatmul.mubr.f32.gmra.mrb[0].mxu0 %v832
        %v951 = vpop.f32.mrb[0].mxu0
        %v952 = vadd.f32 0.0, %v951
        %v953 = vpop.f32.mrb[0].mxu0
        %v954 = vadd.f32 0.0, %v953
        %955 = vmatprep.mubr.f32.mxu0 0.0
        %956 = vmatmul.mubr.f32.gmra.mrb[0].mxu0 %v835
        %v957 = vpop.f32.mrb[0].mxu0
        %v958 = vadd.f32 0.0, %v957
        %v959 = vpop.f32.mrb[0].mxu0
        %v960 = vadd.f32 0.0, %v959
        %961 = vmatprep.mubr.f32.mxu0 0.0
        %962 = vmatmul.mubr.f32.gmra.mrb[0].mxu0 %v838
        %v963 = vpop.f32.mrb[0].mxu0
        %v964 = vadd.f32 0.0, %v963
        %v965 = vpop.f32.mrb[0].mxu0
        %v966 = vadd.f32 0.0, %v965
        %967 = vmatprep.mubr.f32.mxu0 0.0
        %968 = vmatmul.mubr.f32.gmra.mrb[0].mxu0 %v841
        %v969 = vpop.f32.mrb[0].mxu0
        %v970 = vadd.f32 0.0, %v969
        %v971 = vpop.f32.mrb[0].mxu0
        %v972 = vadd.f32 0.0, %v971
        %973 = vmatprep.mubr.f32.mxu0 0.0
        %974 = vmatmul.mubr.f32.gmra.mrb[0].mxu0 %v844
        %v975 = vpop.f32.mrb[0].mxu0
        %v976 = vadd.f32 0.0, %v975
        %v977 = vpop.f32.mrb[0].mxu0
        %v978 = vadd.f32 0.0, %v977
        %979 = vmatprep.mubr.f32.mxu0 0.0
        %980 = vmatmul.mubr.f32.gmra.mrb[0].mxu0 %v847
        %v981 = vpop.f32.mrb[0].mxu0
        %v982 = vadd.f32 0.0, %v981
        %v983 = vpop.f32.mrb[0].mxu0
        %v984 = vadd.f32 0.0, %v983
        %985 = vmatprep.mubr.f32.mxu0 0.0
        %986 = vmatmul.mubr.f32.gmra.mrb[0].mxu0 %v850
        %v987 = vpop.f32.mrb[0].mxu0
        %v988 = vadd.f32 0.0, %v987
        %v989 = vpop.f32.mrb[0].mxu0
        %v990 = vadd.f32 0.0, %v989
        %991 = vmatprep.mubr.f32.mxu0 0.0
        %992 = vmatmul.mubr.f32.gmra.mrb[0].mxu0 %v853
        %v993 = vpop.f32.mrb[0].mxu0
        %v994 = vadd.f32 0.0, %v993
        %v995 = vpop.f32.mrb[0].mxu0
        %v996 = vadd.f32 0.0, %v995
        %997 = vmatprep.mubr.f32.mxu0 0.0
        %998 = vmatmul.mubr.f32.gmra.mrb[0].mxu0 %v856
        %v999 = vpop.f32.mrb[0].mxu0
        %v1000 = vadd.f32 0.0, %v999
        %v1001 = vpop.f32.mrb[0].mxu0
        %v1002 = vadd.f32 0.0, %v1001
        %1003 = vmatprep.mubr.f32.mxu0 0.0
        %1004 = vmatmul.mubr.f32.gmra.mrb[0].mxu0 %v859
        %v1005 = vpop.f32.mrb[0].mxu0
        %v1006 = vadd.f32 0.0, %v1005
        %v1007 = vpop.f32.mrb[0].mxu0
        %v1008 = vadd.f32 0.0, %v1007
        %1009 = vmatprep.mubr.f32.mxu0 0.0
        %1010 = vmatmul.mubr.f32.gmra.mrb[0].mxu0 %v862
        %v1011 = vpop.f32.mrb[0].mxu0
        %v1012 = vadd.f32 0.0, %v1011
        %v1013 = vpop.f32.mrb[0].mxu0
        %v1014 = vadd.f32 0.0, %v1013
        %1015 = vmatprep.mubr.f32.mxu0 0.0
        %1016 = vmatmul.mubr.f32.gmra.mrb[0].mxu0 %v865
        %v1017 = vpop.f32.mrb[0].mxu0
        %v1018 = vadd.f32 0.0, %v1017
        %v1019 = vpop.f32.mrb[0].mxu0
        %v1020 = vadd.f32 0.0, %v1019
        %1021 = vmatprep.mubr.f32.mxu0 0.0
        %1022 = vmatmul.mubr.f32.gmra.mrb[0].mxu0 %v868
        %v1023 = vpop.f32.mrb[0].mxu0
        %v1024 = vadd.f32 0.0, %v1023
        %v1025 = vpop.f32.mrb[0].mxu0
        %v1026 = vadd.f32 0.0, %v1025
        %1027 = vmatprep.mubr.f32.mxu0 0.0
        %1028 = vmatmul.mubr.f32.gmra.mrb[0].mxu0 %v871
        %v1029 = vpop.f32.mrb[0].mxu0
        %v1030 = vadd.f32 0.0, %v1029
        %v1031 = vpop.f32.mrb[0].mxu0
        %v1032 = vadd.f32 0.0, %v1031
        %1033 = vdwg.mxu0
        %v1034 = vmax.f32 %v940, %v942
        %1035 = vmax.xlane.f32.xlu0 %v1034
        %v1036 = vpop.xlane.xlu0 %1035
        %v1037 = vmax.f32 %v946, %v948
        %1038 = vmax.xlane.f32.xlu0 %v1037
        %v1039 = vpop.xlane.xlu0 %1038
        %v1040 = vmax.f32 %v952, %v954
        %1041 = vmax.xlane.f32.xlu0 %v1040
        %v1042 = vpop.xlane.xlu0 %1041
        %v1043 = vmax.f32 %v958, %v960
        %1044 = vmax.xlane.f32.xlu0 %v1043
        %v1045 = vpop.xlane.xlu0 %1044
        %v1046 = vmax.f32 %v964, %v966
        %1047 = vmax.xlane.f32.xlu0 %v1046
        %v1048 = vpop.xlane.xlu0 %1047
        %v1049 = vmax.f32 %v970, %v972
        %1050 = vmax.xlane.f32.xlu0 %v1049
        %v1051 = vpop.xlane.xlu0 %1050
        %v1052 = vmax.f32 %v976, %v978
        %1053 = vmax.xlane.f32.xlu0 %v1052
        %v1054 = vpop.xlane.xlu0 %1053
        %v1055 = vmax.f32 %v982, %v984
        %1056 = vmax.xlane.f32.xlu0 %v1055
        %v1057 = vpop.xlane.xlu0 %1056
        %v1058 = vmax.f32 %v988, %v990
        %1059 = vmax.xlane.f32.xlu0 %v1058
        %v1060 = vpop.xlane.xlu0 %1059
        %v1061 = vmax.f32 %v994, %v996
        %1062 = vmax.xlane.f32.xlu0 %v1061
        %v1063 = vpop.xlane.xlu0 %1062
        %v1064 = vmax.f32 %v1000, %v1002
        %1065 = vmax.xlane.f32.xlu0 %v1064
        %v1066 = vpop.xlane.xlu0 %1065
        %v1067 = vmax.f32 %v1006, %v1008
        %1068 = vmax.xlane.f32.xlu0 %v1067
        %v1069 = vpop.xlane.xlu0 %1068
        %v1070 = vmax.f32 %v1012, %v1014
        %1071 = vmax.xlane.f32.xlu0 %v1070
        %v1072 = vpop.xlane.xlu0 %1071
        %v1073 = vmax.f32 %v1018, %v1020
        %1074 = vmax.xlane.f32.xlu0 %v1073
        %v1075 = vpop.xlane.xlu0 %1074
        %v1076 = vmax.f32 %v1024, %v1026
        %1077 = vmax.xlane.f32.xlu0 %v1076
        %v1078 = vpop.xlane.xlu0 %1077
        %v1079 = vmax.f32 %v1030, %v1032
        %1080 = vmax.xlane.f32.xlu0 %v1079
        %v1081 = vpop.xlane.xlu0 %1080
        %v1082 = vsub.f32 %v940, %v1036
        %v1083 = vsub.f32 %v942, %v1036
        %v1084 = vsub.f32 %v946, %v1039
        %v1085 = vsub.f32 %v948, %v1039
        %v1086 = vsub.f32 %v952, %v1042
        %v1087 = vsub.f32 %v954, %v1042
        %v1088 = vsub.f32 %v958, %v1045
        %v1089 = vsub.f32 %v960, %v1045
        %v1090 = vsub.f32 %v964, %v1048
        %v1091 = vsub.f32 %v966, %v1048
        %v1092 = vsub.f32 %v970, %v1051
        %v1093 = vsub.f32 %v972, %v1051
        %v1094 = vsub.f32 %v976, %v1054
        %v1095 = vsub.f32 %v978, %v1054
        %v1096 = vsub.f32 %v982, %v1057
        %v1097 = vsub.f32 %v984, %v1057
        %v1098 = vsub.f32 %v988, %v1060
        %v1099 = vsub.f32 %v990, %v1060
        %v1100 = vsub.f32 %v994, %v1063
        %v1101 = vsub.f32 %v996, %v1063
        %v1102 = vsub.f32 %v1000, %v1066
        %v1103 = vsub.f32 %v1002, %v1066
        %v1104 = vsub.f32 %v1006, %v1069
        %v1105 = vsub.f32 %v1008, %v1069
        %v1106 = vsub.f32 %v1012, %v1072
        %v1107 = vsub.f32 %v1014, %v1072
        %v1108 = vsub.f32 %v1018, %v1075
        %v1109 = vsub.f32 %v1020, %v1075
        %v1110 = vsub.f32 %v1024, %v1078
        %v1111 = vsub.f32 %v1026, %v1078
        %v1112 = vsub.f32 %v1030, %v1081
        %v1113 = vsub.f32 %v1032, %v1081
        %v1114 = vmul.f32 %v1082, 1.442695
        %v1115 = vpow.pop %v1114
        %v1116 = vmul.f32 %v1083, 1.442695
        %v1117 = vpow.pop %v1116
        %v1118 = vmul.f32 %v1084, 1.442695
        %v1119 = vpow.pop %v1118
        %v1120 = vmul.f32 %v1085, 1.442695
        %v1121 = vpow.pop %v1120
        %v1122 = vmul.f32 %v1086, 1.442695
        %v1123 = vpow.pop %v1122
        %v1124 = vmul.f32 %v1087, 1.442695
        %v1125 = vpow.pop %v1124
        %v1126 = vmul.f32 %v1088, 1.442695
        %v1127 = vpow.pop %v1126
        %v1128 = vmul.f32 %v1089, 1.442695
        %v1129 = vpow.pop %v1128
        %v1130 = vmul.f32 %v1090, 1.442695
        %v1131 = vpow.pop %v1130
        %v1132 = vmul.f32 %v1091, 1.442695
        %v1133 = vpow.pop %v1132
        %v1134 = vmul.f32 %v1092, 1.442695
        %v1135 = vpow.pop %v1134
        %v1136 = vmul.f32 %v1093, 1.442695
        %v1137 = vpow.pop %v1136
        %v1138 = vmul.f32 %v1094, 1.442695
        %v1139 = vpow.pop %v1138
        %v1140 = vmul.f32 %v1095, 1.442695
        %v1141 = vpow.pop %v1140
        %v1142 = vmul.f32 %v1096, 1.442695
        %v1143 = vpow.pop %v1142
        %v1144 = vmul.f32 %v1097, 1.442695
        %v1145 = vpow.pop %v1144
        %v1146 = vmul.f32 %v1098, 1.442695
        %v1147 = vpow.pop %v1146
        %v1148 = vmul.f32 %v1099, 1.442695
        %v1149 = vpow.pop %v1148
        %v1150 = vmul.f32 %v1100, 1.442695
        %v1151 = vpow.pop %v1150
        %v1152 = vmul.f32 %v1101, 1.442695
        %v1153 = vpow.pop %v1152
        %v1154 = vmul.f32 %v1102, 1.442695
        %v1155 = vpow.pop %v1154
        %v1156 = vmul.f32 %v1103, 1.442695
        %v1157 = vpow.pop %v1156
        %v1158 = vmul.f32 %v1104, 1.442695
        %v1159 = vpow.pop %v1158
        %v1160 = vmul.f32 %v1105, 1.442695
        %v1161 = vpow.pop %v1160
        %v1162 = vmul.f32 %v1106, 1.442695
        %v1163 = vpow.pop %v1162
        %v1164 = vmul.f32 %v1107, 1.442695
        %v1165 = vpow.pop %v1164
        %v1166 = vmul.f32 %v1108, 1.442695
        %v1167 = vpow.pop %v1166
        %v1168 = vmul.f32 %v1109, 1.442695
        %v1169 = vpow.pop %v1168
        %v1170 = vmul.f32 %v1110, 1.442695
        %v1171 = vpow.pop %v1170
        %v1172 = vmul.f32 %v1111, 1.442695
        %v1173 = vpow.pop %v1172
        %v1174 = vmul.f32 %v1112, 1.442695
        %v1175 = vpow.pop %v1174
        %v1176 = vmul.f32 %v1113, 1.442695
        %v1177 = vpow.pop %v1176
        %v1178 = vadd.f32 %v1115, %v1117
        %1179 = vadd.xlane.f32.xlu0 %v1178
        %v1180 = vpop.xlane.xlu0 %1179
        %v1181 = vadd.f32 %v1119, %v1121
        %1182 = vadd.xlane.f32.xlu0 %v1181
        %v1183 = vpop.xlane.xlu0 %1182
        %v1184 = vadd.f32 %v1123, %v1125
        %1185 = vadd.xlane.f32.xlu0 %v1184
        %v1186 = vpop.xlane.xlu0 %1185
        %v1187 = vadd.f32 %v1127, %v1129
        %1188 = vadd.xlane.f32.xlu0 %v1187
        %v1189 = vpop.xlane.xlu0 %1188
        %v1190 = vadd.f32 %v1131, %v1133
        %1191 = vadd.xlane.f32.xlu0 %v1190
        %v1192 = vpop.xlane.xlu0 %1191
        %v1193 = vadd.f32 %v1135, %v1137
        %1194 = vadd.xlane.f32.xlu0 %v1193
        %v1195 = vpop.xlane.xlu0 %1194
        %v1196 = vadd.f32 %v1139, %v1141
        %1197 = vadd.xlane.f32.xlu0 %v1196
        %v1198 = vpop.xlane.xlu0 %1197
        %v1199 = vadd.f32 %v1143, %v1145
        %1200 = vadd.xlane.f32.xlu0 %v1199
        %v1201 = vpop.xlane.xlu0 %1200
        %v1202 = vadd.f32 %v1147, %v1149
        %1203 = vadd.xlane.f32.xlu0 %v1202
        %v1204 = vpop.xlane.xlu0 %1203
        %v1205 = vadd.f32 %v1151, %v1153
        %1206 = vadd.xlane.f32.xlu0 %v1205
        %v1207 = vpop.xlane.xlu0 %1206
        %v1208 = vadd.f32 %v1155, %v1157
        %1209 = vadd.xlane.f32.xlu0 %v1208
        %v1210 = vpop.xlane.xlu0 %1209
        %v1211 = vadd.f32 %v1159, %v1161
        %1212 = vadd.xlane.f32.xlu0 %v1211
        %v1213 = vpop.xlane.xlu0 %1212
        %v1214 = vadd.f32 %v1163, %v1165
        %1215 = vadd.xlane.f32.xlu0 %v1214
        %v1216 = vpop.xlane.xlu0 %1215
        %v1217 = vadd.f32 %v1167, %v1169
        %1218 = vadd.xlane.f32.xlu0 %v1217
        %v1219 = vpop.xlane.xlu0 %1218
        %v1220 = vadd.f32 %v1171, %v1173
        %1221 = vadd.xlane.f32.xlu0 %v1220
        %v1222 = vpop.xlane.xlu0 %1221
        %v1223 = vadd.f32 %v1175, %v1177
        %1224 = vadd.xlane.f32.xlu0 %v1223
        %v1225 = vpop.xlane.xlu0 %1224
        %v1226 = vrcp.pop %v1180
        %v1227 = vrcp.pop %v1183
        %v1228 = vrcp.pop %v1186
        %v1229 = vrcp.pop %v1189
        %v1230 = vrcp.pop %v1192
        %v1231 = vrcp.pop %v1195
        %v1232 = vrcp.pop %v1198
        %v1233 = vrcp.pop %v1201
        %v1234 = vrcp.pop %v1204
        %v1235 = vrcp.pop %v1207
        %v1236 = vrcp.pop %v1210
        %v1237 = vrcp.pop %v1213
        %v1238 = vrcp.pop %v1216
        %v1239 = vrcp.pop %v1219
        %v1240 = vrcp.pop %v1222
        %v1241 = vrcp.pop %v1225
        %v1242 = vmul.f32 %v1115, %v1226
        %v1243 = vmul.f32 %v1117, %v1226
        %v1244 = vmul.f32 %v1119, %v1227
        %v1245 = vmul.f32 %v1121, %v1227
        %v1246 = vmul.f32 %v1123, %v1228
        %v1247 = vmul.f32 %v1125, %v1228
        %v1248 = vmul.f32 %v1127, %v1229
        %v1249 = vmul.f32 %v1129, %v1229
        %v1250 = vmul.f32 %v1131, %v1230
        %v1251 = vmul.f32 %v1133, %v1230
        %v1252 = vmul.f32 %v1135, %v1231
        %v1253 = vmul.f32 %v1137, %v1231
        %v1254 = vmul.f32 %v1139, %v1232
        %v1255 = vmul.f32 %v1141, %v1232
        %v1256 = vmul.f32 %v1143, %v1233
        %v1257 = vmul.f32 %v1145, %v1233
        %v1258 = vmul.f32 %v1147, %v1234
        %v1259 = vmul.f32 %v1149, %v1234
        %v1260 = vmul.f32 %v1151, %v1235
        %v1261 = vmul.f32 %v1153, %v1235
        %v1262 = vmul.f32 %v1155, %v1236
        %v1263 = vmul.f32 %v1157, %v1236
        %v1264 = vmul.f32 %v1159, %v1237
        %v1265 = vmul.f32 %v1161, %v1237
        %v1266 = vmul.f32 %v1163, %v1238
        %v1267 = vmul.f32 %v1165, %v1238
        %v1268 = vmul.f32 %v1167, %v1239
        %v1269 = vmul.f32 %v1169, %v1239
        %v1270 = vmul.f32 %v1171, %v1240
        %v1271 = vmul.f32 %v1173, %v1240
        %v1272 = vmul.f32 %v1175, %v1241
        %v1273 = vmul.f32 %v1177, %v1241
        %1274 = vmatprep.subr.mxu0 %v1243
        %1275 = vmatpush1.xpose.msra.mxu0 %v1242
        %1276 = vmatprep.subr.mxu0 %v1245
        %1277 = vmatpush1.xpose.msra.mxu0 %v1244
        %1278 = vmatprep.subr.mxu0 %v1247
        %1279 = vmatpush1.xpose.msra.mxu0 %v1246
        %1280 = vmatprep.subr.mxu0 %v1249
        %1281 = vmatpush1.xpose.msra.mxu0 %v1248
        %1282 = vmatprep.subr.mxu0 %v1251
        %1283 = vmatpush1.xpose.msra.mxu0 %v1250
        %1284 = vmatprep.subr.mxu0 %v1253
        %1285 = vmatpush1.xpose.msra.mxu0 %v1252
        %1286 = vmatprep.subr.mxu0 %v1255
        %1287 = vmatpush1.xpose.msra.mxu0 %v1254
        %1288 = vmatprep.subr.mxu0 %v1257
        %1289 = vmatpush1.xpose.msra.mxu0 %v1256
        %1290 = vmatprep.subr.mxu0 %v1259
        %1291 = vmatpush1.xpose.msra.mxu0 %v1258
        %1292 = vmatprep.subr.mxu0 %v1261
        %1293 = vmatpush1.xpose.msra.mxu0 %v1260
        %1294 = vmatprep.subr.mxu0 %v1263
        %1295 = vmatpush1.xpose.msra.mxu0 %v1262
        %1296 = vmatprep.subr.mxu0 %v1265
        %1297 = vmatpush1.xpose.msra.mxu0 %v1264
        %1298 = vmatprep.subr.mxu0 %v1267
        %1299 = vmatpush1.xpose.msra.mxu0 %v1266
        %1300 = vmatprep.subr.mxu0 %v1269
        %1301 = vmatpush1.xpose.msra.mxu0 %v1268
        %1302 = vmatprep.subr.mxu0 %v1271
        %1303 = vmatpush1.xpose.msra.mxu0 %v1270
        %1304 = vmatprep.subr.mxu0 %v1273
        %1305 = vmatpush1.xpose.msra.mxu0 %v1272
        %1306 = vmatprep.subr.mxu0 0.0
        %1307 = vmatpush1.xpose.msra.mxu0 0.0
        %1308 = vmatprep.subr.mxu0 0.0
        %1309 = vmatpush1.xpose.msra.mxu0 0.0
        %1310 = vmatprep.subr.mxu0 0.0
        %1311 = vmatpush1.xpose.msra.mxu0 0.0
        %1312 = vmatprep.subr.mxu0 0.0
        %1313 = vmatpush1.xpose.msra.mxu0 0.0
        %1314 = vmatprep.subr.mxu0 0.0
        %1315 = vmatpush1.xpose.msra.mxu0 0.0
        %1316 = vmatprep.subr.mxu0 0.0
        %1317 = vmatpush1.xpose.msra.mxu0 0.0
        %1318 = vmatprep.subr.mxu0 0.0
        %1319 = vmatpush1.xpose.msra.mxu0 0.0
        %1320 = vmatprep.subr.mxu0 0.0
        %1321 = vmatpush1.xpose.msra.mxu0 0.0
        %1322 = vmatprep.subr.mxu0 0.0
        %1323 = vmatpush1.xpose.msra.mxu0 0.0
        %1324 = vmatprep.subr.mxu0 0.0
        %1325 = vmatpush1.xpose.msra.mxu0 0.0
        %1326 = vmatprep.subr.mxu0 0.0
        %1327 = vmatpush1.xpose.msra.mxu0 0.0
        %1328 = vmatprep.subr.mxu0 0.0
        %1329 = vmatpush1.xpose.msra.mxu0 0.0
        %1330 = vmatprep.subr.mxu0 0.0
        %1331 = vmatpush1.xpose.msra.mxu0 0.0
        %1332 = vmatprep.subr.mxu0 0.0
        %1333 = vmatpush1.xpose.msra.mxu0 0.0
        %1334 = vmatprep.subr.mxu0 0.0
        %1335 = vmatpush1.xpose.msra.mxu0 0.0
        %1336 = vmatprep.subr.mxu0 0.0
        %1337 = vmatpush1.xpose.msra.mxu0 0.0
        %1338 = vmatprep.mubr.f32.mxu0 %v627
        %1339 = vmatmul.mubr.f32.gmra.mrb[0].mxu0 %v625
        %v1340 = vpop.f32.mrb[0].mxu0
        %v1341 = vadd.f32 0.0, %v1340
        %v1342 = vpop.f32.mrb[0].mxu0
        %1343 = vdwg.mxu0
        %v1344 = vld [vmem:[%s9] sm:$0xf]
        %v1345 = vld [vmem:[%s10] sm:$0xf]
        %v1347 = vsel %vm547, %v1345, 0
        %v1350 = vsel %vm551, %v1341, 0
        %1352 = vmatprep.subr.mxu0 0.0
        %1353 = vmatpush1.msra.mxu0 %v1350
        %1354 = vmatprep.subr.mxu0 0.0
        %1355 = vmatpush1.msra.mxu0 0.0
        %1356 = vmatprep.subr.mxu0 0.0
        %1357 = vmatpush1.msra.mxu0 0.0
        %1358 = vmatprep.subr.mxu0 0.0
        %1359 = vmatpush1.msra.mxu0 0.0
        %1360 = vmatprep.subr.mxu0 0.0
        %1361 = vmatpush1.msra.mxu0 0.0
        %1362 = vmatprep.subr.mxu0 0.0
        %1363 = vmatpush1.msra.mxu0 0.0
        %1364 = vmatprep.subr.mxu0 0.0
        %1365 = vmatpush1.msra.mxu0 0.0
        %1366 = vmatprep.subr.mxu0 0.0
        %1367 = vmatpush1.msra.mxu0 0.0
        %1368 = vmatprep.subr.mxu0 0.0
        %1369 = vmatpush1.msra.mxu0 0.0
        %1370 = vmatprep.subr.mxu0 0.0
        %1371 = vmatpush1.msra.mxu0 0.0
        %1372 = vmatprep.subr.mxu0 0.0
        %1373 = vmatpush1.msra.mxu0 0.0
        %1374 = vmatprep.subr.mxu0 0.0
        %1375 = vmatpush1.msra.mxu0 0.0
        %1376 = vmatprep.subr.mxu0 0.0
        %1377 = vmatpush1.msra.mxu0 0.0
        %1378 = vmatprep.subr.mxu0 0.0
        %1379 = vmatpush1.msra.mxu0 0.0
        %1380 = vmatprep.subr.mxu0 0.0
        %1381 = vmatpush1.msra.mxu0 0.0
        %1382 = vmatprep.subr.mxu0 0.0
        %1383 = vmatpush1.msra.mxu0 0.0
        %1384 = vmatprep.subr.mxu0 0.0
        %1385 = vmatpush1.msra.mxu0 0.0
        %1386 = vmatprep.subr.mxu0 0.0
        %1387 = vmatpush1.msra.mxu0 0.0
        %1388 = vmatprep.subr.mxu0 0.0
        %1389 = vmatpush1.msra.mxu0 0.0
        %1390 = vmatprep.subr.mxu0 0.0
        %1391 = vmatpush1.msra.mxu0 0.0
        %1392 = vmatprep.subr.mxu0 0.0
        %1393 = vmatpush1.msra.mxu0 0.0
        %1394 = vmatprep.subr.mxu0 0.0
        %1395 = vmatpush1.msra.mxu0 0.0
        %1396 = vmatprep.subr.mxu0 0.0
        %1397 = vmatpush1.msra.mxu0 0.0
        %1398 = vmatprep.subr.mxu0 0.0
        %1399 = vmatpush1.msra.mxu0 0.0
        %1400 = vmatprep.subr.mxu0 0.0
        %1401 = vmatpush1.msra.mxu0 0.0
        %1402 = vmatprep.subr.mxu0 0.0
        %1403 = vmatpush1.msra.mxu0 0.0
        %1404 = vmatprep.subr.mxu0 0.0
        %1405 = vmatpush1.msra.mxu0 0.0
        %1406 = vmatprep.subr.mxu0 0.0
        %1407 = vmatpush1.msra.mxu0 0.0
        %1408 = vmatprep.subr.mxu0 0.0
        %1409 = vmatpush1.msra.mxu0 0.0
        %1410 = vmatprep.subr.mxu0 0.0
        %1411 = vmatpush1.msra.mxu0 0.0
        %1412 = vmatprep.subr.mxu0 0.0
        %1413 = vmatpush1.msra.mxu0 0.0
        %1414 = vmatprep.subr.mxu0 0.0
        %1415 = vmatpush1.msra.mxu0 0.0
        %1416 = vmatprep.mubr.f32.mxu0 0.0
        %1417 = vmatmul.mubr.f32.gmra.mrb[0].mxu0 %v1347
        %v1418 = vpop.f32.mrb[0].mxu0
        %v1419 = vadd.f32 0.0, %v1418
        %v1420 = vpop.f32.mrb[0].mxu0
        %1421 = vdwg.mxu0
        %v1423 = vsel %vm547, %v1344, 0
        %v1426 = vsel %vm551, %v790, 0
        %1428 = vmatprep.subr.mxu0 0.0
        %1429 = vmatpush1.msra.mxu0 %v1426
        %1430 = vmatprep.subr.mxu0 0.0
        %1431 = vmatpush1.msra.mxu0 0.0
        %1432 = vmatprep.subr.mxu0 0.0
        %1433 = vmatpush1.msra.mxu0 0.0
        %1434 = vmatprep.subr.mxu0 0.0
        %1435 = vmatpush1.msra.mxu0 0.0
        %1436 = vmatprep.subr.mxu0 0.0
        %1437 = vmatpush1.msra.mxu0 0.0
        %1438 = vmatprep.subr.mxu0 0.0
        %1439 = vmatpush1.msra.mxu0 0.0
        %1440 = vmatprep.subr.mxu0 0.0
        %1441 = vmatpush1.msra.mxu0 0.0
        %1442 = vmatprep.subr.mxu0 0.0
        %1443 = vmatpush1.msra.mxu0 0.0
        %1444 = vmatprep.subr.mxu0 0.0
        %1445 = vmatpush1.msra.mxu0 0.0
        %1446 = vmatprep.subr.mxu0 0.0
        %1447 = vmatpush1.msra.mxu0 0.0
        %1448 = vmatprep.subr.mxu0 0.0
        %1449 = vmatpush1.msra.mxu0 0.0
        %1450 = vmatprep.subr.mxu0 0.0
        %1451 = vmatpush1.msra.mxu0 0.0
        %1452 = vmatprep.subr.mxu0 0.0
        %1453 = vmatpush1.msra.mxu0 0.0
        %1454 = vmatprep.subr.mxu0 0.0
        %1455 = vmatpush1.msra.mxu0 0.0
        %1456 = vmatprep.subr.mxu0 0.0
        %1457 = vmatpush1.msra.mxu0 0.0
        %1458 = vmatprep.subr.mxu0 0.0
        %1459 = vmatpush1.msra.mxu0 0.0
        %1460 = vmatprep.subr.mxu0 0.0
        %1461 = vmatpush1.msra.mxu0 0.0
        %1462 = vmatprep.subr.mxu0 0.0
        %1463 = vmatpush1.msra.mxu0 0.0
        %1464 = vmatprep.subr.mxu0 0.0
        %1465 = vmatpush1.msra.mxu0 0.0
        %1466 = vmatprep.subr.mxu0 0.0
        %1467 = vmatpush1.msra.mxu0 0.0
        %1468 = vmatprep.subr.mxu0 0.0
        %1469 = vmatpush1.msra.mxu0 0.0
        %1470 = vmatprep.subr.mxu0 0.0
        %1471 = vmatpush1.msra.mxu0 0.0
        %1472 = vmatprep.subr.mxu0 0.0
        %1473 = vmatpush1.msra.mxu0 0.0
        %1474 = vmatprep.subr.mxu0 0.0
        %1475 = vmatpush1.msra.mxu0 0.0
        %1476 = vmatprep.subr.mxu0 0.0
        %1477 = vmatpush1.msra.mxu0 0.0
        %1478 = vmatprep.subr.mxu0 0.0
        %1479 = vmatpush1.msra.mxu0 0.0
        %1480 = vmatprep.subr.mxu0 0.0
        %1481 = vmatpush1.msra.mxu0 0.0
        %1482 = vmatprep.subr.mxu0 0.0
        %1483 = vmatpush1.msra.mxu0 0.0
        %1484 = vmatprep.subr.mxu0 0.0
        %1485 = vmatpush1.msra.mxu0 0.0
        %1486 = vmatprep.subr.mxu0 0.0
        %1487 = vmatpush1.msra.mxu0 0.0
        %1488 = vmatprep.subr.mxu0 0.0
        %1489 = vmatpush1.msra.mxu0 0.0
        %1490 = vmatprep.subr.mxu0 0.0
        %1491 = vmatpush1.msra.mxu0 0.0
        %1492 = vmatprep.mubr.f32.mxu0 0.0
        %1493 = vmatmul.mubr.f32.gmra.mrb[0].mxu0 %v1423
        %v1494 = vpop.f32.mrb[0].mxu0
        %v1495 = vadd.f32 %v1419, %v1494
        %v1496 = vpop.f32.mrb[0].mxu0
        %1497 = vdwg.mxu0
        %v1498 = vld [vmem:[%s11] sm:$0xf]
        %1500 = vset.pattern.permute.xlu0 0
        %1501 = vperm.xlu0 %1500, %v1498
        %v1502 = vpop.permute.xlu0 %1501
        %v1504 = vadd.f32 %v1495, %v1502
        %1505 = vst [vmem:[%s443] sm:$0xf] %v1504
        %s1506 = sand.u32 %s308, 1
        %s1507 = scalar_lea.sflag [#allocation4], %s1506
        %s1508 = sand.u32 %s308, 1
        %s1509 = smul.addr %s1508, 4
        %s1510 = scalar_lea.vmem [#allocation5], %s1509
        // Predicated region
        $region73: #{tpu_custom_call.1} parent=67 // pred_check
          %p1511 = pneg %p318
        $region74: #{tpu_custom_call.1} parent=67 // pred_check_branch
          %1513 = sbr.rel (%p1511) target = $region76
        $region75: #{tpu_custom_call.1} parent=67 // pred_region
          %s1515 = ssub.s32 64, 64
          %1516 = vsyncadd %s1507, %s1515
          %s1517 = smul.addr %s33, 2
          %s1518 = sadd.s32 %s34, %s1517
          %s1519 = smul.addr %s1518, 64
          %s1520 = scalar_lea.hbm %s12, %s1519
          %s1522 = sshll.u32 %s1510, 4
          %s1523 = int_to_ptr.vmem [resolvable:$true] %s1522
          %1525 = dma.vmem_to_hbm [thread:$0]  %s1523, 64, %s1520, %s1507
        $region76: #{tpu_custom_call.1} parent=67 // pred_fallthru
          _
      $region68: #{tpu_custom_call.1} parent=5 // pred_fallthru
        _
      %p1526 = scmp.le.s32.totalorder 2, %s24
      // Predicated region
      $region77: #{tpu_custom_call.1} parent=5 // pred_check
        %p1527 = pneg %p1526
      $region78: #{tpu_custom_call.1} parent=5 // pred_check_branch
        %1529 = sbr.rel (%p1527) target = $region80
      $region79: #{tpu_custom_call.1} parent=5 // pred_region
        %s1530 = ssub.s32 %s24, 2
        // Predicated region
        $region81: #{tpu_custom_call.1} parent=79 // pred_check
          %p1531 = pneg %p324
        $region82: #{tpu_custom_call.1} parent=79 // pred_check_branch
          %1533 = sbr.rel (%p1531) target = $region84
        $region83: #{tpu_custom_call.1} parent=79 // pred_region
          %s1534 = sand.u32 %s309, 1
          %s1535 = scalar_lea.sflag [#allocation4], %s1534
          %s1536 = sand.u32 %s309, 1
          %s1537 = smul.addr %s1536, 4
          %s1538 = scalar_lea.vmem [#allocation5], %s1537
          %1539 = dma.done %s1535, 64
        $region84: #{tpu_custom_call.1} parent=79 // pred_fallthru
          _
      $region80: #{tpu_custom_call.1} parent=5 // pred_fallthru
        _
    $region6: #{tpu_custom_call.1} parent=1 // loop_footer
      %s28 = sadd.s32 1, %s24
    $region7: #{tpu_custom_call.1} parent=1 // loop_footer_branch
      %23 = sbr.rel target = $region3
    $region8: #{tpu_custom_call.1} parent=1 // loop_exit
      _
    %1540 = vsyncpa [#allocation3], 1
    %s1541 = scalar_lea.sflag [#allocation3], 1
    %1542 = vsyncpa %s1541, 1
    %1543 = vsyncpa [#allocation4], 1
    %s1544 = scalar_lea.sflag [#allocation4], 1
    %1545 = vsyncpa %s1544, 1

</llo_original>
